<compile_context>
chip_gen: v6e
topology: v6e:2x2x1
jax: 0.10.0
libtpu: 0.0.40
codegen_flags: <defaults>
</compile_context>

<pallas_src>
import jax
import jax.numpy as jnp
from jax.experimental import pallas as pl
from jax.experimental.pallas import tpu as pltpu


def _round_up(x, m):
    return (x + m - 1) // m * m


def _pick_tile(dim, target, align):
    """Largest legal tile <= target: the full dim if it fits, else a divisor of dim that is a
    multiple of `align` (so no padding copy is needed), else `target` (caller pads)."""
    if dim <= target:
        return dim
    for t in range(target, align - 1, -align):
        if dim % t == 0:
            return t
    return target


_VMEM_LIMIT = 48 * 1024 * 1024   # above 16/32 MiB scoped defaults, below v7x's 64 MiB physical.
_MM_PARAMS_3D = pltpu.CompilerParams(
    dimension_semantics=("parallel", "parallel", "arbitrary"),
    vmem_limit_bytes=_VMEM_LIMIT)
_MM_PARAMS_2D = pltpu.CompilerParams(
    dimension_semantics=("parallel", "parallel"),
    vmem_limit_bytes=_VMEM_LIMIT)
_EW_PARAMS = pltpu.CompilerParams(
    dimension_semantics=("parallel",),
    vmem_limit_bytes=_VMEM_LIMIT)


# ---------------------------------------------------------------------------
# Pallas kernels
# ---------------------------------------------------------------------------

def _make_matmul_kernel_single(relu, has_res):
    """out = relu?(A @ B + bias [+ residual]) with a single K step (no accumulator scratch)."""
    if has_res:
        def kernel(a_ref, b_ref, bias_ref, res_ref, o_ref):
            r = jnp.dot(a_ref[...], b_ref[...], preferred_element_type=jnp.float32)
            r = r + bias_ref[...] + res_ref[...].astype(jnp.float32)
            if relu:
                r = jnp.maximum(r, 0.0)
            o_ref[...] = r.astype(o_ref.dtype)
    else:
        def kernel(a_ref, b_ref, bias_ref, o_ref):
            r = jnp.dot(a_ref[...], b_ref[...], preferred_element_type=jnp.float32)
            r = r + bias_ref[...]
            if relu:
                r = jnp.maximum(r, 0.0)
            o_ref[...] = r.astype(o_ref.dtype)
    return kernel


def _make_matmul_kernel_multi(relu, has_res):
    """Same, but K is tiled on the last grid axis with an f32 VMEM accumulator."""
    if has_res:
        def kernel(a_ref, b_ref, bias_ref, res_ref, o_ref, acc_ref):
            @pl.when(pl.program_id(2) == 0)
            def _():
                acc_ref[...] = jnp.zeros_like(acc_ref)
            acc_ref[...] += jnp.dot(a_ref[...], b_ref[...],
                                    preferred_element_type=jnp.float32)

            @pl.when(pl.program_id(2) == pl.num_programs(2) - 1)
            def _():
                r = acc_ref[...] + bias_ref[...] + res_ref[...].astype(jnp.float32)
                if relu:
                    r = jnp.maximum(r, 0.0)
                o_ref[...] = r.astype(o_ref.dtype)
    else:
        def kernel(a_ref, b_ref, bias_ref, o_ref, acc_ref):
            @pl.when(pl.program_id(2) == 0)
            def _():
                acc_ref[...] = jnp.zeros_like(acc_ref)
            acc_ref[...] += jnp.dot(a_ref[...], b_ref[...],
                                    preferred_element_type=jnp.float32)

            @pl.when(pl.program_id(2) == pl.num_programs(2) - 1)
            def _():
                r = acc_ref[...] + bias_ref[...]
                if relu:
                    r = jnp.maximum(r, 0.0)
                o_ref[...] = r.astype(o_ref.dtype)
    return kernel


def _max9_kernel(*refs):
    # 9 shifted (rows, C) views of the padded map folded with max; last ref is the output.
    o_ref = refs[-1]
    m = refs[0][...]
    for r in refs[1:-1]:
        m = jnp.maximum(m, r[...])
    o_ref[...] = m


def _convt_final_kernel(a_ref, b_ref, bias_ref, wsel_ref, bsel_ref, o_ref):
    """Last decoder stage: ConvTranspose2d(32->16,k2,s2) matmul + bias + ReLU, then the
    Conv2d(16->1,k1) reduction per (dy,dx) group via a block-diagonal selector — all in-kernel,
    so the full-resolution 16-channel map never touches HBM."""
    p = jnp.dot(a_ref[...], b_ref[...], preferred_element_type=jnp.float32)
    p = jnp.maximum(p + bias_ref[...], 0.0)
    o_ref[...] = (jnp.dot(p, wsel_ref[...], preferred_element_type=jnp.float32)
                  + bsel_ref[...])


# ---------------------------------------------------------------------------
# Tiled call wrappers
# ---------------------------------------------------------------------------

def pallas_matmul(a, b, bias=None, relu=False, residual=None, out_dtype=jnp.bfloat16):
    """relu?(A @ B + bias [+ residual]).  A:(M,K), B:(K,N) bf16, bias:(N,) f32,
    residual:(M,N) (any dtype).  f32 accumulate/epilogue; stores in out_dtype."""
    M, K = a.shape
    _, N = b.shape
    tm = _pick_tile(M, 512, 8)
    tn = _pick_tile(N, 256, 128)     # 256 keeps >=2 parallel N tiles for v7x deep layers
    tk = _pick_tile(K, 4608, 128)    # every K in this net fits one step (max 9*512=4608)
    Mp, Np, Kp = _round_up(M, tm), _round_up(N, tn), _round_up(K, tk)
    if (Mp, Kp) != (M, K):
        a = jnp.pad(a, ((0, Mp - M), (0, Kp - K)))
    if (Kp, Np) != (K, N):
        b = jnp.pad(b, ((0, Kp - K), (0, Np - N)))
    if bias is None:
        bias = jnp.zeros((N,), jnp.float32)
    bias = bias.astype(jnp.float32)
    if Np != N:
        bias = jnp.pad(bias, (0, Np - N))
    bias = bias.reshape(1, Np)

    has_res = residual is not None
    if has_res:
        res = residual
        if (Mp, Np) != (M, N):
            res = jnp.pad(res, ((0, Mp - M), (0, Np - N)))

    if Kp == tk:                      # single K step: no accumulator, no phase predication
        in_specs = [pl.BlockSpec((tm, Kp), lambda i, j: (i, 0)),
                    pl.BlockSpec((Kp, tn), lambda i, j: (0, j)),
                    pl.BlockSpec((1, tn), lambda i, j: (0, j))]
        args = [a, b, bias]
        if has_res:
            in_specs.append(pl.BlockSpec((tm, tn), lambda i, j: (i, j)))
            args.append(res)
        out = pl.pallas_call(
            _make_matmul_kernel_single(relu, has_res),
            out_shape=jax.ShapeDtypeStruct((Mp, Np), out_dtype),
            grid_spec=pltpu.PrefetchScalarGridSpec(
                num_scalar_prefetch=0,
                grid=(Mp // tm, Np // tn),
                in_specs=in_specs,
                out_specs=pl.BlockSpec((tm, tn), lambda i, j: (i, j)),
            ),
            compiler_params=_MM_PARAMS_2D,
        )(*args)
    else:
        in_specs = [pl.BlockSpec((tm, tk), lambda i, j, k: (i, k)),
                    pl.BlockSpec((tk, tn), lambda i, j, k: (k, j)),
                    pl.BlockSpec((1, tn), lambda i, j, k: (0, j))]
        args = [a, b, bias]
        if has_res:
            in_specs.append(pl.BlockSpec((tm, tn), lambda i, j, k: (i, j)))
            args.append(res)
        out = pl.pallas_call(
            _make_matmul_kernel_multi(relu, has_res),
            out_shape=jax.ShapeDtypeStruct((Mp, Np), out_dtype),
            grid_spec=pltpu.PrefetchScalarGridSpec(
                num_scalar_prefetch=0,
                grid=(Mp // tm, Np // tn, Kp // tk),
                in_specs=in_specs,
                out_specs=pl.BlockSpec((tm, tn), lambda i, j, k: (i, j)),
                scratch_shapes=[pltpu.VMEM((tm, tn), jnp.float32)],
            ),
            compiler_params=_MM_PARAMS_3D,
        )(*args)
    if (Mp, Np) != (M, N):
        out = out[:M, :N]
    return out


def _row_tiled_call(kernel, inputs, rows, cols, out_dtype, target=1024):
    """Run an elementwise kernel over (rows, cols) inputs tiled along rows (parallel grid)."""
    tr = _pick_tile(rows, target, 8)
    rp = _round_up(rows, tr)
    if rp != rows:
        inputs = [jnp.pad(x, ((0, rp - rows), (0, 0))) for x in inputs]
    out = pl.pallas_call(
        kernel,
        out_shape=jax.ShapeDtypeStruct((rp, cols), out_dtype),
        grid_spec=pltpu.PrefetchScalarGridSpec(
            num_scalar_prefetch=0,
            grid=(rp // tr,),
            in_specs=[pl.BlockSpec((tr, cols), lambda i: (i, 0)) for _ in inputs],
            out_specs=pl.BlockSpec((tr, cols), lambda i: (i, 0)),
        ),
        compiler_params=_EW_PARAMS,
    )(*inputs)
    return out[:rows] if rp != rows else out


# ---------------------------------------------------------------------------
# Layer wrappers (im2col / reshapes in JAX, all compute in Pallas)
# ---------------------------------------------------------------------------

def _im2col(x_nhwc, kh, kw, stride, pad):
    # TODO(synk): im2col still materialises kh*kw shifted copies in HBM; a direct-conv kernel
    # with the kernel positions on the K reduction axis would cut conv LHS traffic up to ~9x.
    N, H, W, C = x_nhwc.shape
    xp = (jnp.pad(x_nhwc, ((0, 0), (pad, pad), (pad, pad), (0, 0)))
          if pad else x_nhwc)
    Ho = (H + 2 * pad - kh) // stride + 1
    Wo = (W + 2 * pad - kw) // stride + 1
    if kh == 1 and kw == 1 and stride == 1:
        return xp.reshape(N * Ho * Wo, C), (N, Ho, Wo)
    cols = [xp[:, dy:dy + stride * Ho:stride, dx:dx + stride * Wo:stride, :]
            for dy in range(kh) for dx in range(kw)]
    patches = jnp.concatenate(cols, axis=-1)             # (N, Ho, Wo, kh*kw*C)
    return patches.reshape(N * Ho * Wo, kh * kw * C), (N, Ho, Wo)


def conv2d(x_nhwc, w, stride, pad, bias=None, relu=False, residual=None,
           out_dtype=jnp.bfloat16):
    """w in PyTorch layout (Cout, Cin, kh, kw); x already bf16.  Optional fused residual+ReLU."""
    Cout, Cin, kh, kw = w.shape
    patches, (N, Ho, Wo) = _im2col(x_nhwc, kh, kw, stride, pad)
    w_mat = jnp.transpose(w, (2, 3, 1, 0)).reshape(kh * kw * Cin, Cout).astype(jnp.bfloat16)
    res = residual.reshape(N * Ho * Wo, Cout) if residual is not None else None
    out = pallas_matmul(patches, w_mat, bias=bias, relu=relu, residual=res,
                        out_dtype=out_dtype)
    return out.reshape(N, Ho, Wo, Cout)


def conv_transpose2x2(x_nhwc, w, bias, relu=True):
    """ConvTranspose2d(kernel=2, stride=2).  w in PyTorch layout (Cin, Cout, 2, 2)."""
    Cin, Cout, kh, kw = w.shape
    N, H, W, _ = x_nhwc.shape
    w_mat = jnp.transpose(w, (0, 2, 3, 1)).reshape(Cin, kh * kw * Cout).astype(jnp.bfloat16)
    bias_tiled = jnp.tile(bias, (kh * kw,))               # matches (dy, dx, cout) column order
    out = pallas_matmul(x_nhwc.reshape(N * H * W, Cin), w_mat,
                        bias=bias_tiled, relu=relu, out_dtype=jnp.bfloat16)
    out = out.reshape(N, H, W, kh, kw, Cout)
    # TODO(synk): fold the (dy,dx) spatial interleave into a strided out_spec index_map instead
    # of this XLA transpose pass (one HBM round-trip per decoder stage, now halved by bf16).
    return out.transpose(0, 1, 3, 2, 4, 5).reshape(N, H * kh, W * kw, Cout)


def conv_transpose2x2_final(x_nhwc, wt, bt, wf, bf_):
    """Last decoder stage fused with the final 1x1 conv: ConvTranspose2d(32,16,2,2)+ReLU followed
    by Conv2d(16,1,1), producing (N, 2H, 2W, 1) float32 logits with no 16-channel HBM tensor."""
    Cin, Cout, kh, kw = wt.shape                           # (32, 16, 2, 2)
    N, H, W, _ = x_nhwc.shape
    KK = kh * kw                                           # 4 (dy,dx) groups
    rows = N * H * W

    w_mat = jnp.transpose(wt, (0, 2, 3, 1)).reshape(Cin, KK * Cout).astype(jnp.bfloat16)
    bias_t = jnp.tile(bt, (KK,)).astype(jnp.float32).reshape(1, KK * Cout)
    wf_vec = wf.reshape(Cout).astype(jnp.float32)
    wsel = jnp.zeros((KK * Cout, KK), jnp.float32)         # block-diagonal 16->1 selector
    for g in range(KK):
        wsel = wsel.at[g * Cout:(g + 1) * Cout, g].set(wf_vec)
    bsel = jnp.broadcast_to(bf_.reshape(1, 1).astype(jnp.float32), (1, KK))

    a = x_nhwc.reshape(rows, Cin)
    tm = _pick_tile(rows, 512, 8)
    Mp = _round_up(rows, tm)
    if Mp != rows:
        a = jnp.pad(a, ((0, Mp - rows), (0, 0)))

    out = pl.pallas_call(
        _convt_final_kernel,
        out_shape=jax.ShapeDtypeStruct((Mp, KK), jnp.float32),
        grid_spec=pltpu.PrefetchScalarGridSpec(
            num_scalar_prefetch=0,
            grid=(Mp // tm,),
            in_specs=[
                pl.BlockSpec((tm, Cin), lambda i: (i, 0)),
                pl.BlockSpec((Cin, KK * Cout), lambda i: (0, 0)),
                pl.BlockSpec((1, KK * Cout), lambda i: (0, 0)),
                pl.BlockSpec((KK * Cout, KK), lambda i: (0, 0)),
                pl.BlockSpec((1, KK), lambda i: (0, 0)),
            ],
            out_specs=pl.BlockSpec((tm, KK), lambda i: (i, 0)),
        ),
        compiler_params=_EW_PARAMS,
    )(a, w_mat, bias_t, wsel, bsel)
    out = out[:rows] if Mp != rows else out
    out = out.reshape(N, H, W, kh, kw, 1).transpose(0, 1, 3, 2, 4, 5)
    return out.reshape(N, H * kh, W * kw, 1)


def fold_bn(w, bn, conv_bias=None):
    """Fold eval-mode BatchNorm into the preceding conv (kept in f32).
    TODO(synk): train-mode BN (batch statistics) not implemented; inference semantics used."""
    scale = bn["gamma"] * jax.lax.rsqrt(bn["var"] + 1e-5)
    shift = bn["beta"] - bn["mean"] * scale
    w_f = w * scale[:, None, None, None]
    b_f = shift if conv_bias is None else conv_bias * scale + shift
    return w_f, b_f


def maxpool3x3_s2(x_nhwc):
    N, H, W, C = x_nhwc.shape
    xp = jnp.pad(x_nhwc, ((0, 0), (1, 1), (1, 1), (0, 0)), constant_values=-jnp.inf)
    Ho = (H + 2 - 3) // 2 + 1
    Wo = (W + 2 - 3) // 2 + 1
    rows = N * Ho * Wo
    # TODO(synk): replace the XLA strided views with in-kernel strided reads of a single halo'd
    # block to cut pool input traffic ~9x further.
    views = [xp[:, dy:dy + 2 * Ho:2, dx:dx + 2 * Wo:2, :].reshape(rows, C)
             for dy in range(3) for dx in range(3)]
    # pack narrow channel counts (C=64) onto the full 128-lane axis; elementwise max is layout-free
    pack = 1
    if C < 128 and 128 % C == 0 and rows % (128 // C) == 0:
        pack = 128 // C
    if pack > 1:
        views = [v.reshape(rows // pack, C * pack) for v in views]
    out = _row_tiled_call(_max9_kernel, views, rows // pack, C * pack,
                          out_dtype=x_nhwc.dtype, target=1024)
    return out.reshape(N, Ho, Wo, C)


def basic_block(x, p, stride):
    w1, b1 = fold_bn(p["conv1"], p["bn1"])
    out = conv2d(x, w1, stride=stride, pad=1, bias=b1, relu=True)      # conv+BN+ReLU fused
    if "ds_conv" in p:
        wd, bd = fold_bn(p["ds_conv"], p["ds_bn"])
        idn = conv2d(x, wd, stride=stride, pad=0, bias=bd, relu=False)
    else:
        idn = x
    w2, b2 = fold_bn(p["conv2"], p["bn2"])
    # conv+BN + residual add + ReLU all fused in the matmul epilogue
    return conv2d(out, w2, stride=1, pad=1, bias=b2, relu=True, residual=idn)


# ---------------------------------------------------------------------------
# Full forward pass: ResNet18 (children()[:-2]) encoder + transposed-conv decoder
# ---------------------------------------------------------------------------

def floor_segmentation_forward(params, x_nchw):
    x = jnp.transpose(x_nchw, (0, 2, 3, 1)).astype(jnp.bfloat16)       # NCHW -> NHWC, bf16 acts

    # encoder: stem (conv7x7 + folded BN + ReLU), maxpool, layer1..layer4
    w, b = fold_bn(params["conv1"], params["bn1"])
    x = conv2d(x, w, stride=2, pad=3, bias=b, relu=True)
    x = maxpool3x3_s2(x)
    for name, first_stride in (("layer1", 1), ("layer2", 2),
                               ("layer3", 2), ("layer4", 2)):
        blk0, blk1 = params[name]
        x = basic_block(x, blk0, first_stride)
        x = basic_block(x, blk1, 1)

    # decoder: 4x (ConvTranspose2d(k=2,s=2)+ReLU), then the last stage fused with Conv2d(16->1)
    dec = params["decoder_t"]
    for p in dec[:-1]:
        x = conv_transpose2x2(x, p["w"], p["b"], relu=True)
    fc = params["final_conv"]
    x = conv_transpose2x2_final(x, dec[-1]["w"], dec[-1]["b"], fc["w"], fc["b"])

    # forward() does NOT apply self.final_activation (Sigmoid) -> return logits.
    return jnp.transpose(x, (0, 3, 1, 2))                              # NHWC -> NCHW, f32


# ---------------------------------------------------------------------------
# Deterministic parameter initialization (synthetic weights, no checkpoint)
# ---------------------------------------------------------------------------

def init_params(key):
    keys = jax.random.split(key, 256)
    cnt = [0]

    def nk():
        k = keys[cnt[0]]
        cnt[0] += 1
        return k

    def conv_w(cout, cin, k):
        fan_in = cin * k * k
        return jax.random.normal(nk(), (cout, cin, k, k), jnp.float32) * jnp.sqrt(2.0 / fan_in)

    def convT_w(cin, cout, k):
        fan_in = cin * k * k
        return jax.random.normal(nk(), (cin, cout, k, k), jnp.float32) * jnp.sqrt(2.0 / fan_in)

    def bias_v(c):
        return jax.random.normal(nk(), (c,), jnp.float32) * 0.01

    def bn_p(c):
        return {
            "gamma": jax.random.uniform(nk(), (c,), jnp.float32, minval=0.5, maxval=1.5),
            "beta": jax.random.normal(nk(), (c,), jnp.float32) * 0.1,
            "mean": jax.random.normal(nk(), (c,), jnp.float32) * 0.1,
            "var": jax.random.uniform(nk(), (c,), jnp.float32, minval=0.5, maxval=1.5),
        }

    def block_p(cin, cout, downsample):
        p = {"conv1": conv_w(cout, cin, 3), "bn1": bn_p(cout),
             "conv2": conv_w(cout, cout, 3), "bn2": bn_p(cout)}
        if downsample:
            p["ds_conv"] = conv_w(cout, cin, 1)
            p["ds_bn"] = bn_p(cout)
        return p

    return {
        "conv1": conv_w(64, 3, 7),
        "bn1": bn_p(64),
        "layer1": [block_p(64, 64, False), block_p(64, 64, False)],
        "layer2": [block_p(64, 128, True), block_p(128, 128, False)],
        "layer3": [block_p(128, 256, True), block_p(256, 256, False)],
        "layer4": [block_p(256, 512, True), block_p(512, 512, False)],
        "decoder_t": [
            {"w": convT_w(512, 256, 2), "b": bias_v(256)},
            {"w": convT_w(256, 128, 2), "b": bias_v(128)},
            {"w": convT_w(128, 64, 2), "b": bias_v(64)},
            {"w": convT_w(64, 32, 2), "b": bias_v(32)},
            {"w": convT_w(32, 16, 2), "b": bias_v(16)},
        ],
        "final_conv": {"w": conv_w(1, 16, 1), "b": bias_v(1)},
    }


# ---------------------------------------------------------------------------

if __name__ == "__main__":
    key = jax.random.PRNGKey(0)
    pkey, xkey = jax.random.split(key)
    params = init_params(pkey)

    # Small input consistent with the module: NCHW RGB image, spatial multiple of 32
    # (ResNet18 encoder downsamples x32, the decoder upsamples x32 back).
    x = jax.random.normal(xkey, (2, 3, 64, 64), jnp.float32)

    fwd = jax.jit(floor_segmentation_forward)
    out = jax.block_until_ready(fwd(params, x))

    assert out.shape == (2, 1, 64, 64), out.shape
    assert out.dtype == jnp.float32
    assert bool(jnp.all(jnp.isfinite(out)))
    print("KERNEL_OK")
</pallas_src>

<mosaic_0001>
module attributes {stable_mosaic.version = 11 : i64} {
  func.func @kernel(%arg0: i32, %arg1: i32, %arg2: memref<512x147xbf16, #tpu.memory_space<vmem>>, %arg3: memref<147x64xbf16, #tpu.memory_space<vmem>>, %arg4: memref<1x64xf32, #tpu.memory_space<vmem>>, %arg5: memref<512x64xbf16, #tpu.memory_space<vmem>>) attributes {dimension_semantics = [#tpu.dimension_semantics<parallel>, #tpu.dimension_semantics<parallel>], iteration_bounds = array<i64: 4, 1>, scalar_prefetch = 0 : i64, scratch_operands = 0 : i64, tpu.core_type = #tpu.core_type<tc>, window_params = [{transform_indices = @transform_0, window_bounds = array<i64: 512, 147>}, {transform_indices = @transform_1, window_bounds = array<i64: 147, 64>}, {transform_indices = @transform_2, window_bounds = array<i64: 1, 64>}, {transform_indices = @transform_3, window_bounds = array<i64: 512, 64>}]} {
    %c0 = arith.constant 0 : index
    %c0_0 = arith.constant 0 : index
    %0 = vector.load %arg2[%c0, %c0_0] : memref<512x147xbf16, #tpu.memory_space<vmem>>, vector<512x147xbf16>
    %c0_1 = arith.constant 0 : index
    %c0_2 = arith.constant 0 : index
    %1 = vector.load %arg3[%c0_1, %c0_2] : memref<147x64xbf16, #tpu.memory_space<vmem>>, vector<147x64xbf16>
    %cst = arith.constant dense<0.000000e+00> : vector<512x64xf32>
    %2 = tpu.matmul %0, %1, %cst {dimension_numbers = #tpu.dot_dimension_numbers<[1], [0], [0], [1], [0, 0, 1, 1], [], []>} : vector<512x147xbf16>, vector<147x64xbf16>, vector<512x64xf32> -> vector<512x64xf32>
    %c0_3 = arith.constant 0 : index
    %c0_4 = arith.constant 0 : index
    %3 = vector.load %arg4[%c0_3, %c0_4] : memref<1x64xf32, #tpu.memory_space<vmem>>, vector<1x64xf32>
    %4 = vector.broadcast %3 : vector<1x64xf32> to vector<512x64xf32>
    %5 = arith.addf %2, %4 : vector<512x64xf32>
    %cst_5 = arith.constant 0.000000e+00 : f32
    %6 = vector.broadcast %cst_5 : f32 to vector<512x64xf32>
    %7 = arith.maximumf %5, %6 : vector<512x64xf32>
    %8 = arith.truncf %7 : vector<512x64xf32> to vector<512x64xbf16>
    %c0_6 = arith.constant 0 : index
    %c0_7 = arith.constant 0 : index
    %9 = vector.load %arg5[%c0_6, %c0_7] : memref<512x64xbf16, #tpu.memory_space<vmem>>, vector<512x64xbf16>
    tpu.vector_store %arg5[%c0_6, %c0_7], %8 {strides = array<i32>} : memref<512x64xbf16, #tpu.memory_space<vmem>>, vector<512x64xbf16>,
    return
  }
  func.func @transform_0(%arg0: i32, %arg1: i32) -> (i32, i32) {
    %c0_i32 = arith.constant 0 : i32
    %c0_i32_0 = arith.constant 0 : i32
    return %arg0, %c0_i32 : i32, i32
  }
  func.func @transform_1(%arg0: i32, %arg1: i32) -> (i32, i32) {
    %c0_i32 = arith.constant 0 : i32
    %c0_i32_0 = arith.constant 0 : i32
    return %c0_i32, %arg1 : i32, i32
  }
  func.func @transform_2(%arg0: i32, %arg1: i32) -> (i32, i32) {
    %c0_i32 = arith.constant 0 : i32
    %c0_i32_0 = arith.constant 0 : i32
    return %c0_i32, %arg1 : i32, i32
  }
  func.func @transform_3(%arg0: i32, %arg1: i32) -> (i32, i32) {
    %c0_i32 = arith.constant 0 : i32
    return %arg0, %arg1 : i32, i32
  }
}

module attributes {stable_mosaic.version = 11 : i64} {
  func.func @_max9_kernel(%arg0: i32, %arg1: memref<256x128xbf16, #tpu.memory_space<vmem>>, %arg2: memref<256x128xbf16, #tpu.memory_space<vmem>>, %arg3: memref<256x128xbf16, #tpu.memory_space<vmem>>, %arg4: memref<256x128xbf16, #tpu.memory_space<vmem>>, %arg5: memref<256x128xbf16, #tpu.memory_space<vmem>>, %arg6: memref<256x128xbf16, #tpu.memory_space<vmem>>, %arg7: memref<256x128xbf16, #tpu.memory_space<vmem>>, %arg8: memref<256x128xbf16, #tpu.memory_space<vmem>>, %arg9: memref<256x128xbf16, #tpu.memory_space<vmem>>, %arg10: memref<256x128xbf16, #tpu.memory_space<vmem>>) attributes {dimension_semantics = [#tpu.dimension_semantics<parallel>], iteration_bounds = array<i64: 1>, scalar_prefetch = 0 : i64, scratch_operands = 0 : i64, tpu.core_type = #tpu.core_type<tc>, window_params = [{transform_indices = @transform_0, window_bounds = array<i64: 256, 128>}, {transform_indices = @transform_1, window_bounds = array<i64: 256, 128>}, {transform_indices = @transform_2, window_bounds = array<i64: 256, 128>}, {transform_indices = @transform_3, window_bounds = array<i64: 256, 128>}, {transform_indices = @transform_4, window_bounds = array<i64: 256, 128>}, {transform_indices = @transform_5, window_bounds = array<i64: 256, 128>}, {transform_indices = @transform_6, window_bounds = array<i64: 256, 128>}, {transform_indices = @transform_7, window_bounds = array<i64: 256, 128>}, {transform_indices = @transform_8, window_bounds = array<i64: 256, 128>}, {transform_indices = @transform_9, window_bounds = array<i64: 256, 128>}]} {
    %c0 = arith.constant 0 : index
    %c0_0 = arith.constant 0 : index
    %0 = vector.load %arg1[%c0, %c0_0] : memref<256x128xbf16, #tpu.memory_space<vmem>>, vector<256x128xbf16>
    %c0_1 = arith.constant 0 : index
    %c0_2 = arith.constant 0 : index
    %1 = vector.load %arg2[%c0_1, %c0_2] : memref<256x128xbf16, #tpu.memory_space<vmem>>, vector<256x128xbf16>
    %2 = arith.maximumf %0, %1 : vector<256x128xbf16>
    %c0_3 = arith.constant 0 : index
    %c0_4 = arith.constant 0 : index
    %3 = vector.load %arg3[%c0_3, %c0_4] : memref<256x128xbf16, #tpu.memory_space<vmem>>, vector<256x128xbf16>
    %4 = arith.maximumf %2, %3 : vector<256x128xbf16>
    %c0_5 = arith.constant 0 : index
    %c0_6 = arith.constant 0 : index
    %5 = vector.load %arg4[%c0_5, %c0_6] : memref<256x128xbf16, #tpu.memory_space<vmem>>, vector<256x128xbf16>
    %6 = arith.maximumf %4, %5 : vector<256x128xbf16>
    %c0_7 = arith.constant 0 : index
    %c0_8 = arith.constant 0 : index
    %7 = vector.load %arg5[%c0_7, %c0_8] : memref<256x128xbf16, #tpu.memory_space<vmem>>, vector<256x128xbf16>
    %8 = arith.maximumf %6, %7 : vector<256x128xbf16>
    %c0_9 = arith.constant 0 : index
    %c0_10 = arith.constant 0 : index
    %9 = vector.load %arg6[%c0_9, %c0_10] : memref<256x128xbf16, #tpu.memory_space<vmem>>, vector<256x128xbf16>
    %10 = arith.maximumf %8, %9 : vector<256x128xbf16>
    %c0_11 = arith.constant 0 : index
    %c0_12 = arith.constant 0 : index
    %11 = vector.load %arg7[%c0_11, %c0_12] : memref<256x128xbf16, #tpu.memory_space<vmem>>, vector<256x128xbf16>
    %12 = arith.maximumf %10, %11 : vector<256x128xbf16>
    %c0_13 = arith.constant 0 : index
    %c0_14 = arith.constant 0 : index
    %13 = vector.load %arg8[%c0_13, %c0_14] : memref<256x128xbf16, #tpu.memory_space<vmem>>, vector<256x128xbf16>
    %14 = arith.maximumf %12, %13 : vector<256x128xbf16>
    %c0_15 = arith.constant 0 : index
    %c0_16 = arith.constant 0 : index
    %15 = vector.load %arg9[%c0_15, %c0_16] : memref<256x128xbf16, #tpu.memory_space<vmem>>, vector<256x128xbf16>
    %16 = arith.maximumf %14, %15 : vector<256x128xbf16>
    %c0_17 = arith.constant 0 : index
    %c0_18 = arith.constant 0 : index
    %17 = vector.load %arg10[%c0_17, %c0_18] : memref<256x128xbf16, #tpu.memory_space<vmem>>, vector<256x128xbf16>
    tpu.vector_store %arg10[%c0_17, %c0_18], %16 {strides = array<i32>} : memref<256x128xbf16, #tpu.memory_space<vmem>>, vector<256x128xbf16>,
    return
  }
  func.func @transform_0(%arg0: i32) -> (i32, i32) {
    %c0_i32 = arith.constant 0 : i32
    %c0_i32_0 = arith.constant 0 : i32
    return %arg0, %c0_i32 : i32, i32
  }
  func.func @transform_1(%arg0: i32) -> (i32, i32) {
    %c0_i32 = arith.constant 0 : i32
    %c0_i32_0 = arith.constant 0 : i32
    return %arg0, %c0_i32 : i32, i32
  }
  func.func @transform_2(%arg0: i32) -> (i32, i32) {
    %c0_i32 = arith.constant 0 : i32
    %c0_i32_0 = arith.constant 0 : i32
    return %arg0, %c0_i32 : i32, i32
  }
  func.func @transform_3(%arg0: i32) -> (i32, i32) {
    %c0_i32 = arith.constant 0 : i32
    %c0_i32_0 = arith.constant 0 : i32
    return %arg0, %c0_i32 : i32, i32
  }
  func.func @transform_4(%arg0: i32) -> (i32, i32) {
    %c0_i32 = arith.constant 0 : i32
    %c0_i32_0 = arith.constant 0 : i32
    return %arg0, %c0_i32 : i32, i32
  }
  func.func @transform_5(%arg0: i32) -> (i32, i32) {
    %c0_i32 = arith.constant 0 : i32
    %c0_i32_0 = arith.constant 0 : i32
    return %arg0, %c0_i32 : i32, i32
  }
  func.func @transform_6(%arg0: i32) -> (i32, i32) {
    %c0_i32 = arith.constant 0 : i32
    %c0_i32_0 = arith.constant 0 : i32
    return %arg0, %c0_i32 : i32, i32
  }
  func.func @transform_7(%arg0: i32) -> (i32, i32) {
    %c0_i32 = arith.constant 0 : i32
    %c0_i32_0 = arith.constant 0 : i32
    return %arg0, %c0_i32 : i32, i32
  }
  func.func @transform_8(%arg0: i32) -> (i32, i32) {
    %c0_i32 = arith.constant 0 : i32
    %c0_i32_0 = arith.constant 0 : i32
    return %arg0, %c0_i32 : i32, i32
  }
  func.func @transform_9(%arg0: i32) -> (i32, i32) {
    %c0_i32 = arith.constant 0 : i32
    %c0_i32_0 = arith.constant 0 : i32
    return %arg0, %c0_i32 : i32, i32
  }
}

module attributes {stable_mosaic.version = 11 : i64} {
  func.func @kernel(%arg0: i32, %arg1: i32, %arg2: memref<512x576xbf16, #tpu.memory_space<vmem>>, %arg3: memref<576x64xbf16, #tpu.memory_space<vmem>>, %arg4: memref<1x64xf32, #tpu.memory_space<vmem>>, %arg5: memref<512x64xbf16, #tpu.memory_space<vmem>>) attributes {dimension_semantics = [#tpu.dimension_semantics<parallel>, #tpu.dimension_semantics<parallel>], iteration_bounds = array<i64: 1, 1>, scalar_prefetch = 0 : i64, scratch_operands = 0 : i64, tpu.core_type = #tpu.core_type<tc>, window_params = [{transform_indices = @transform_0, window_bounds = array<i64: 512, 576>}, {transform_indices = @transform_1, window_bounds = array<i64: 576, 64>}, {transform_indices = @transform_2, window_bounds = array<i64: 1, 64>}, {transform_indices = @transform_3, window_bounds = array<i64: 512, 64>}]} {
    %c0 = arith.constant 0 : index
    %c0_0 = arith.constant 0 : index
    %0 = vector.load %arg2[%c0, %c0_0] : memref<512x576xbf16, #tpu.memory_space<vmem>>, vector<512x576xbf16>
    %c0_1 = arith.constant 0 : index
    %c0_2 = arith.constant 0 : index
    %1 = vector.load %arg3[%c0_1, %c0_2] : memref<576x64xbf16, #tpu.memory_space<vmem>>, vector<576x64xbf16>
    %cst = arith.constant dense<0.000000e+00> : vector<512x64xf32>
    %2 = tpu.matmul %0, %1, %cst {dimension_numbers = #tpu.dot_dimension_numbers<[1], [0], [0], [1], [0, 0, 1, 1], [], []>} : vector<512x576xbf16>, vector<576x64xbf16>, vector<512x64xf32> -> vector<512x64xf32>
    %c0_3 = arith.constant 0 : index
    %c0_4 = arith.constant 0 : index
    %3 = vector.load %arg4[%c0_3, %c0_4] : memref<1x64xf32, #tpu.memory_space<vmem>>, vector<1x64xf32>
    %4 = vector.broadcast %3 : vector<1x64xf32> to vector<512x64xf32>
    %5 = arith.addf %2, %4 : vector<512x64xf32>
    %cst_5 = arith.constant 0.000000e+00 : f32
    %6 = vector.broadcast %cst_5 : f32 to vector<512x64xf32>
    %7 = arith.maximumf %5, %6 : vector<512x64xf32>
    %8 = arith.truncf %7 : vector<512x64xf32> to vector<512x64xbf16>
    %c0_6 = arith.constant 0 : index
    %c0_7 = arith.constant 0 : index
    %9 = vector.load %arg5[%c0_6, %c0_7] : memref<512x64xbf16, #tpu.memory_space<vmem>>, vector<512x64xbf16>
    tpu.vector_store %arg5[%c0_6, %c0_7], %8 {strides = array<i32>} : memref<512x64xbf16, #tpu.memory_space<vmem>>, vector<512x64xbf16>,
    return
  }
  func.func @transform_0(%arg0: i32, %arg1: i32) -> (i32, i32) {
    %c0_i32 = arith.constant 0 : i32
    %c0_i32_0 = arith.constant 0 : i32
    return %arg0, %c0_i32 : i32, i32
  }
  func.func @transform_1(%arg0: i32, %arg1: i32) -> (i32, i32) {
    %c0_i32 = arith.constant 0 : i32
    %c0_i32_0 = arith.constant 0 : i32
    return %c0_i32, %arg1 : i32, i32
  }
  func.func @transform_2(%arg0: i32, %arg1: i32) -> (i32, i32) {
    %c0_i32 = arith.constant 0 : i32
    %c0_i32_0 = arith.constant 0 : i32
    return %c0_i32, %arg1 : i32, i32
  }
  func.func @transform_3(%arg0: i32, %arg1: i32) -> (i32, i32) {
    %c0_i32 = arith.constant 0 : i32
    return %arg0, %arg1 : i32, i32
  }
}

module attributes {stable_mosaic.version = 11 : i64} {
  func.func @kernel(%arg0: i32, %arg1: i32, %arg2: memref<512x576xbf16, #tpu.memory_space<vmem>>, %arg3: memref<576x64xbf16, #tpu.memory_space<vmem>>, %arg4: memref<1x64xf32, #tpu.memory_space<vmem>>, %arg5: memref<512x64xbf16, #tpu.memory_space<vmem>>, %arg6: memref<512x64xbf16, #tpu.memory_space<vmem>>) attributes {dimension_semantics = [#tpu.dimension_semantics<parallel>, #tpu.dimension_semantics<parallel>], iteration_bounds = array<i64: 1, 1>, scalar_prefetch = 0 : i64, scratch_operands = 0 : i64, tpu.core_type = #tpu.core_type<tc>, window_params = [{transform_indices = @transform_0, window_bounds = array<i64: 512, 576>}, {transform_indices = @transform_1, window_bounds = array<i64: 576, 64>}, {transform_indices = @transform_2, window_bounds = array<i64: 1, 64>}, {transform_indices = @transform_3, window_bounds = array<i64: 512, 64>}, {transform_indices = @transform_4, window_bounds = array<i64: 512, 64>}]} {
    %c0 = arith.constant 0 : index
    %c0_0 = arith.constant 0 : index
    %0 = vector.load %arg2[%c0, %c0_0] : memref<512x576xbf16, #tpu.memory_space<vmem>>, vector<512x576xbf16>
    %c0_1 = arith.constant 0 : index
    %c0_2 = arith.constant 0 : index
    %1 = vector.load %arg3[%c0_1, %c0_2] : memref<576x64xbf16, #tpu.memory_space<vmem>>, vector<576x64xbf16>
    %cst = arith.constant dense<0.000000e+00> : vector<512x64xf32>
    %2 = tpu.matmul %0, %1, %cst {dimension_numbers = #tpu.dot_dimension_numbers<[1], [0], [0], [1], [0, 0, 1, 1], [], []>} : vector<512x576xbf16>, vector<576x64xbf16>, vector<512x64xf32> -> vector<512x64xf32>
    %c0_3 = arith.constant 0 : index
    %c0_4 = arith.constant 0 : index
    %3 = vector.load %arg4[%c0_3, %c0_4] : memref<1x64xf32, #tpu.memory_space<vmem>>, vector<1x64xf32>
    %4 = vector.broadcast %3 : vector<1x64xf32> to vector<512x64xf32>
    %5 = arith.addf %2, %4 : vector<512x64xf32>
    %c0_5 = arith.constant 0 : index
    %c0_6 = arith.constant 0 : index
    %6 = vector.load %arg5[%c0_5, %c0_6] : memref<512x64xbf16, #tpu.memory_space<vmem>>, vector<512x64xbf16>
    %7 = arith.extf %6 : vector<512x64xbf16> to vector<512x64xf32>
    %8 = arith.addf %5, %7 : vector<512x64xf32>
    %cst_7 = arith.constant 0.000000e+00 : f32
    %9 = vector.broadcast %cst_7 : f32 to vector<512x64xf32>
    %10 = arith.maximumf %8, %9 : vector<512x64xf32>
    %11 = arith.truncf %10 : vector<512x64xf32> to vector<512x64xbf16>
    %c0_8 = arith.constant 0 : index
    %c0_9 = arith.constant 0 : index
    %12 = vector.load %arg6[%c0_8, %c0_9] : memref<512x64xbf16, #tpu.memory_space<vmem>>, vector<512x64xbf16>
    tpu.vector_store %arg6[%c0_8, %c0_9], %11 {strides = array<i32>} : memref<512x64xbf16, #tpu.memory_space<vmem>>, vector<512x64xbf16>,
    return
  }
  func.func @transform_0(%arg0: i32, %arg1: i32) -> (i32, i32) {
    %c0_i32 = arith.constant 0 : i32
    %c0_i32_0 = arith.constant 0 : i32
    return %arg0, %c0_i32 : i32, i32
  }
  func.func @transform_1(%arg0: i32, %arg1: i32) -> (i32, i32) {
    %c0_i32 = arith.constant 0 : i32
    %c0_i32_0 = arith.constant 0 : i32
    return %c0_i32, %arg1 : i32, i32
  }
  func.func @transform_2(%arg0: i32, %arg1: i32) -> (i32, i32) {
    %c0_i32 = arith.constant 0 : i32
    %c0_i32_0 = arith.constant 0 : i32
    return %c0_i32, %arg1 : i32, i32
  }
  func.func @transform_3(%arg0: i32, %arg1: i32) -> (i32, i32) {
    %c0_i32 = arith.constant 0 : i32
    return %arg0, %arg1 : i32, i32
  }
  func.func @transform_4(%arg0: i32, %arg1: i32) -> (i32, i32) {
    %c0_i32 = arith.constant 0 : i32
    return %arg0, %arg1 : i32, i32
  }
}

module attributes {stable_mosaic.version = 11 : i64} {
  func.func @kernel(%arg0: i32, %arg1: i32, %arg2: memref<128x576xbf16, #tpu.memory_space<vmem>>, %arg3: memref<576x128xbf16, #tpu.memory_space<vmem>>, %arg4: memref<1x128xf32, #tpu.memory_space<vmem>>, %arg5: memref<128x128xbf16, #tpu.memory_space<vmem>>) attributes {dimension_semantics = [#tpu.dimension_semantics<parallel>, #tpu.dimension_semantics<parallel>], iteration_bounds = array<i64: 1, 1>, scalar_prefetch = 0 : i64, scratch_operands = 0 : i64, tpu.core_type = #tpu.core_type<tc>, window_params = [{transform_indices = @transform_0, window_bounds = array<i64: 128, 576>}, {transform_indices = @transform_1, window_bounds = array<i64: 576, 128>}, {transform_indices = @transform_2, window_bounds = array<i64: 1, 128>}, {transform_indices = @transform_3, window_bounds = array<i64: 128, 128>}]} {
    %c0 = arith.constant 0 : index
    %c0_0 = arith.constant 0 : index
    %0 = vector.load %arg2[%c0, %c0_0] : memref<128x576xbf16, #tpu.memory_space<vmem>>, vector<128x576xbf16>
    %c0_1 = arith.constant 0 : index
    %c0_2 = arith.constant 0 : index
    %1 = vector.load %arg3[%c0_1, %c0_2] : memref<576x128xbf16, #tpu.memory_space<vmem>>, vector<576x128xbf16>
    %cst = arith.constant dense<0.000000e+00> : vector<128x128xf32>
    %2 = tpu.matmul %0, %1, %cst {dimension_numbers = #tpu.dot_dimension_numbers<[1], [0], [0], [1], [0, 0, 1, 1], [], []>} : vector<128x576xbf16>, vector<576x128xbf16>, vector<128x128xf32> -> vector<128x128xf32>
    %c0_3 = arith.constant 0 : index
    %c0_4 = arith.constant 0 : index
    %3 = vector.load %arg4[%c0_3, %c0_4] : memref<1x128xf32, #tpu.memory_space<vmem>>, vector<1x128xf32>
    %4 = vector.broadcast %3 : vector<1x128xf32> to vector<128x128xf32>
    %5 = arith.addf %2, %4 : vector<128x128xf32>
    %cst_5 = arith.constant 0.000000e+00 : f32
    %6 = vector.broadcast %cst_5 : f32 to vector<128x128xf32>
    %7 = arith.maximumf %5, %6 : vector<128x128xf32>
    %8 = arith.truncf %7 : vector<128x128xf32> to vector<128x128xbf16>
    %c0_6 = arith.constant 0 : index
    %c0_7 = arith.constant 0 : index
    %9 = vector.load %arg5[%c0_6, %c0_7] : memref<128x128xbf16, #tpu.memory_space<vmem>>, vector<128x128xbf16>
    tpu.vector_store %arg5[%c0_6, %c0_7], %8 {strides = array<i32>} : memref<128x128xbf16, #tpu.memory_space<vmem>>, vector<128x128xbf16>,
    return
  }
  func.func @transform_0(%arg0: i32, %arg1: i32) -> (i32, i32) {
    %c0_i32 = arith.constant 0 : i32
    %c0_i32_0 = arith.constant 0 : i32
    return %arg0, %c0_i32 : i32, i32
  }
  func.func @transform_1(%arg0: i32, %arg1: i32) -> (i32, i32) {
    %c0_i32 = arith.constant 0 : i32
    %c0_i32_0 = arith.constant 0 : i32
    return %c0_i32, %arg1 : i32, i32
  }
  func.func @transform_2(%arg0: i32, %arg1: i32) -> (i32, i32) {
    %c0_i32 = arith.constant 0 : i32
    %c0_i32_0 = arith.constant 0 : i32
    return %c0_i32, %arg1 : i32, i32
  }
  func.func @transform_3(%arg0: i32, %arg1: i32) -> (i32, i32) {
    %c0_i32 = arith.constant 0 : i32
    return %arg0, %arg1 : i32, i32
  }
}

module attributes {stable_mosaic.version = 11 : i64} {
  func.func @kernel(%arg0: i32, %arg1: i32, %arg2: memref<128x64xbf16, #tpu.memory_space<vmem>>, %arg3: memref<64x128xbf16, #tpu.memory_space<vmem>>, %arg4: memref<1x128xf32, #tpu.memory_space<vmem>>, %arg5: memref<128x128xbf16, #tpu.memory_space<vmem>>) attributes {dimension_semantics = [#tpu.dimension_semantics<parallel>, #tpu.dimension_semantics<parallel>], iteration_bounds = array<i64: 1, 1>, scalar_prefetch = 0 : i64, scratch_operands = 0 : i64, tpu.core_type = #tpu.core_type<tc>, window_params = [{transform_indices = @transform_0, window_bounds = array<i64: 128, 64>}, {transform_indices = @transform_1, window_bounds = array<i64: 64, 128>}, {transform_indices = @transform_2, window_bounds = array<i64: 1, 128>}, {transform_indices = @transform_3, window_bounds = array<i64: 128, 128>}]} {
    %c0 = arith.constant 0 : index
    %c0_0 = arith.constant 0 : index
    %0 = vector.load %arg2[%c0, %c0_0] : memref<128x64xbf16, #tpu.memory_space<vmem>>, vector<128x64xbf16>
    %c0_1 = arith.constant 0 : index
    %c0_2 = arith.constant 0 : index
    %1 = vector.load %arg3[%c0_1, %c0_2] : memref<64x128xbf16, #tpu.memory_space<vmem>>, vector<64x128xbf16>
    %cst = arith.constant dense<0.000000e+00> : vector<128x128xf32>
    %2 = tpu.matmul %0, %1, %cst {dimension_numbers = #tpu.dot_dimension_numbers<[1], [0], [0], [1], [0, 0, 1, 1], [], []>} : vector<128x64xbf16>, vector<64x128xbf16>, vector<128x128xf32> -> vector<128x128xf32>
    %c0_3 = arith.constant 0 : index
    %c0_4 = arith.constant 0 : index
    %3 = vector.load %arg4[%c0_3, %c0_4] : memref<1x128xf32, #tpu.memory_space<vmem>>, vector<1x128xf32>
    %4 = vector.broadcast %3 : vector<1x128xf32> to vector<128x128xf32>
    %5 = arith.addf %2, %4 : vector<128x128xf32>
    %6 = arith.truncf %5 : vector<128x128xf32> to vector<128x128xbf16>
    %c0_5 = arith.constant 0 : index
    %c0_6 = arith.constant 0 : index
    %7 = vector.load %arg5[%c0_5, %c0_6] : memref<128x128xbf16, #tpu.memory_space<vmem>>, vector<128x128xbf16>
    tpu.vector_store %arg5[%c0_5, %c0_6], %6 {strides = array<i32>} : memref<128x128xbf16, #tpu.memory_space<vmem>>, vector<128x128xbf16>,
    return
  }
  func.func @transform_0(%arg0: i32, %arg1: i32) -> (i32, i32) {
    %c0_i32 = arith.constant 0 : i32
    %c0_i32_0 = arith.constant 0 : i32
    return %arg0, %c0_i32 : i32, i32
  }
  func.func @transform_1(%arg0: i32, %arg1: i32) -> (i32, i32) {
    %c0_i32 = arith.constant 0 : i32
    %c0_i32_0 = arith.constant 0 : i32
    return %c0_i32, %arg1 : i32, i32
  }
  func.func @transform_2(%arg0: i32, %arg1: i32) -> (i32, i32) {
    %c0_i32 = arith.constant 0 : i32
    %c0_i32_0 = arith.constant 0 : i32
    return %c0_i32, %arg1 : i32, i32
  }
  func.func @transform_3(%arg0: i32, %arg1: i32) -> (i32, i32) {
    %c0_i32 = arith.constant 0 : i32
    return %arg0, %arg1 : i32, i32
  }
}

module attributes {stable_mosaic.version = 11 : i64} {
  func.func @kernel(%arg0: i32, %arg1: i32, %arg2: memref<128x1152xbf16, #tpu.memory_space<vmem>>, %arg3: memref<1152x128xbf16, #tpu.memory_space<vmem>>, %arg4: memref<1x128xf32, #tpu.memory_space<vmem>>, %arg5: memref<128x128xbf16, #tpu.memory_space<vmem>>, %arg6: memref<128x128xbf16, #tpu.memory_space<vmem>>) attributes {dimension_semantics = [#tpu.dimension_semantics<parallel>, #tpu.dimension_semantics<parallel>], iteration_bounds = array<i64: 1, 1>, scalar_prefetch = 0 : i64, scratch_operands = 0 : i64, tpu.core_type = #tpu.core_type<tc>, window_params = [{transform_indices = @transform_0, window_bounds = array<i64: 128, 1152>}, {transform_indices = @transform_1, window_bounds = array<i64: 1152, 128>}, {transform_indices = @transform_2, window_bounds = array<i64: 1, 128>}, {transform_indices = @transform_3, window_bounds = array<i64: 128, 128>}, {transform_indices = @transform_4, window_bounds = array<i64: 128, 128>}]} {
    %c0 = arith.constant 0 : index
    %c0_0 = arith.constant 0 : index
    %0 = vector.load %arg2[%c0, %c0_0] : memref<128x1152xbf16, #tpu.memory_space<vmem>>, vector<128x1152xbf16>
    %c0_1 = arith.constant 0 : index
    %c0_2 = arith.constant 0 : index
    %1 = vector.load %arg3[%c0_1, %c0_2] : memref<1152x128xbf16, #tpu.memory_space<vmem>>, vector<1152x128xbf16>
    %cst = arith.constant dense<0.000000e+00> : vector<128x128xf32>
    %2 = tpu.matmul %0, %1, %cst {dimension_numbers = #tpu.dot_dimension_numbers<[1], [0], [0], [1], [0, 0, 1, 1], [], []>} : vector<128x1152xbf16>, vector<1152x128xbf16>, vector<128x128xf32> -> vector<128x128xf32>
    %c0_3 = arith.constant 0 : index
    %c0_4 = arith.constant 0 : index
    %3 = vector.load %arg4[%c0_3, %c0_4] : memref<1x128xf32, #tpu.memory_space<vmem>>, vector<1x128xf32>
    %4 = vector.broadcast %3 : vector<1x128xf32> to vector<128x128xf32>
    %5 = arith.addf %2, %4 : vector<128x128xf32>
    %c0_5 = arith.constant 0 : index
    %c0_6 = arith.constant 0 : index
    %6 = vector.load %arg5[%c0_5, %c0_6] : memref<128x128xbf16, #tpu.memory_space<vmem>>, vector<128x128xbf16>
    %7 = arith.extf %6 : vector<128x128xbf16> to vector<128x128xf32>
    %8 = arith.addf %5, %7 : vector<128x128xf32>
    %cst_7 = arith.constant 0.000000e+00 : f32
    %9 = vector.broadcast %cst_7 : f32 to vector<128x128xf32>
    %10 = arith.maximumf %8, %9 : vector<128x128xf32>
    %11 = arith.truncf %10 : vector<128x128xf32> to vector<128x128xbf16>
    %c0_8 = arith.constant 0 : index
    %c0_9 = arith.constant 0 : index
    %12 = vector.load %arg6[%c0_8, %c0_9] : memref<128x128xbf16, #tpu.memory_space<vmem>>, vector<128x128xbf16>
    tpu.vector_store %arg6[%c0_8, %c0_9], %11 {strides = array<i32>} : memref<128x128xbf16, #tpu.memory_space<vmem>>, vector<128x128xbf16>,
    return
  }
  func.func @transform_0(%arg0: i32, %arg1: i32) -> (i32, i32) {
    %c0_i32 = arith.constant 0 : i32
    %c0_i32_0 = arith.constant 0 : i32
    return %arg0, %c0_i32 : i32, i32
  }
  func.func @transform_1(%arg0: i32, %arg1: i32) -> (i32, i32) {
    %c0_i32 = arith.constant 0 : i32
    %c0_i32_0 = arith.constant 0 : i32
    return %c0_i32, %arg1 : i32, i32
  }
  func.func @transform_2(%arg0: i32, %arg1: i32) -> (i32, i32) {
    %c0_i32 = arith.constant 0 : i32
    %c0_i32_0 = arith.constant 0 : i32
    return %c0_i32, %arg1 : i32, i32
  }
  func.func @transform_3(%arg0: i32, %arg1: i32) -> (i32, i32) {
    %c0_i32 = arith.constant 0 : i32
    return %arg0, %arg1 : i32, i32
  }
  func.func @transform_4(%arg0: i32, %arg1: i32) -> (i32, i32) {
    %c0_i32 = arith.constant 0 : i32
    return %arg0, %arg1 : i32, i32
  }
}

module attributes {stable_mosaic.version = 11 : i64} {
  func.func @kernel(%arg0: i32, %arg1: i32, %arg2: memref<128x1152xbf16, #tpu.memory_space<vmem>>, %arg3: memref<1152x128xbf16, #tpu.memory_space<vmem>>, %arg4: memref<1x128xf32, #tpu.memory_space<vmem>>, %arg5: memref<128x128xbf16, #tpu.memory_space<vmem>>) attributes {dimension_semantics = [#tpu.dimension_semantics<parallel>, #tpu.dimension_semantics<parallel>], iteration_bounds = array<i64: 1, 1>, scalar_prefetch = 0 : i64, scratch_operands = 0 : i64, tpu.core_type = #tpu.core_type<tc>, window_params = [{transform_indices = @transform_0, window_bounds = array<i64: 128, 1152>}, {transform_indices = @transform_1, window_bounds = array<i64: 1152, 128>}, {transform_indices = @transform_2, window_bounds = array<i64: 1, 128>}, {transform_indices = @transform_3, window_bounds = array<i64: 128, 128>}]} {
    %c0 = arith.constant 0 : index
    %c0_0 = arith.constant 0 : index
    %0 = vector.load %arg2[%c0, %c0_0] : memref<128x1152xbf16, #tpu.memory_space<vmem>>, vector<128x1152xbf16>
    %c0_1 = arith.constant 0 : index
    %c0_2 = arith.constant 0 : index
    %1 = vector.load %arg3[%c0_1, %c0_2] : memref<1152x128xbf16, #tpu.memory_space<vmem>>, vector<1152x128xbf16>
    %cst = arith.constant dense<0.000000e+00> : vector<128x128xf32>
    %2 = tpu.matmul %0, %1, %cst {dimension_numbers = #tpu.dot_dimension_numbers<[1], [0], [0], [1], [0, 0, 1, 1], [], []>} : vector<128x1152xbf16>, vector<1152x128xbf16>, vector<128x128xf32> -> vector<128x128xf32>
    %c0_3 = arith.constant 0 : index
    %c0_4 = arith.constant 0 : index
    %3 = vector.load %arg4[%c0_3, %c0_4] : memref<1x128xf32, #tpu.memory_space<vmem>>, vector<1x128xf32>
    %4 = vector.broadcast %3 : vector<1x128xf32> to vector<128x128xf32>
    %5 = arith.addf %2, %4 : vector<128x128xf32>
    %cst_5 = arith.constant 0.000000e+00 : f32
    %6 = vector.broadcast %cst_5 : f32 to vector<128x128xf32>
    %7 = arith.maximumf %5, %6 : vector<128x128xf32>
    %8 = arith.truncf %7 : vector<128x128xf32> to vector<128x128xbf16>
    %c0_6 = arith.constant 0 : index
    %c0_7 = arith.constant 0 : index
    %9 = vector.load %arg5[%c0_6, %c0_7] : memref<128x128xbf16, #tpu.memory_space<vmem>>, vector<128x128xbf16>
    tpu.vector_store %arg5[%c0_6, %c0_7], %8 {strides = array<i32>} : memref<128x128xbf16, #tpu.memory_space<vmem>>, vector<128x128xbf16>,
    return
  }
  func.func @transform_0(%arg0: i32, %arg1: i32) -> (i32, i32) {
    %c0_i32 = arith.constant 0 : i32
    %c0_i32_0 = arith.constant 0 : i32
    return %arg0, %c0_i32 : i32, i32
  }
  func.func @transform_1(%arg0: i32, %arg1: i32) -> (i32, i32) {
    %c0_i32 = arith.constant 0 : i32
    %c0_i32_0 = arith.constant 0 : i32
    return %c0_i32, %arg1 : i32, i32
  }
  func.func @transform_2(%arg0: i32, %arg1: i32) -> (i32, i32) {
    %c0_i32 = arith.constant 0 : i32
    %c0_i32_0 = arith.constant 0 : i32
    return %c0_i32, %arg1 : i32, i32
  }
  func.func @transform_3(%arg0: i32, %arg1: i32) -> (i32, i32) {
    %c0_i32 = arith.constant 0 : i32
    return %arg0, %arg1 : i32, i32
  }
}

module attributes {stable_mosaic.version = 11 : i64} {
  func.func @kernel(%arg0: i32, %arg1: i32, %arg2: memref<32x1152xbf16, #tpu.memory_space<vmem>>, %arg3: memref<1152x256xbf16, #tpu.memory_space<vmem>>, %arg4: memref<1x256xf32, #tpu.memory_space<vmem>>, %arg5: memref<32x256xbf16, #tpu.memory_space<vmem>>) attributes {dimension_semantics = [#tpu.dimension_semantics<parallel>, #tpu.dimension_semantics<parallel>], iteration_bounds = array<i64: 1, 1>, scalar_prefetch = 0 : i64, scratch_operands = 0 : i64, tpu.core_type = #tpu.core_type<tc>, window_params = [{transform_indices = @transform_0, window_bounds = array<i64: 32, 1152>}, {transform_indices = @transform_1, window_bounds = array<i64: 1152, 256>}, {transform_indices = @transform_2, window_bounds = array<i64: 1, 256>}, {transform_indices = @transform_3, window_bounds = array<i64: 32, 256>}]} {
    %c0 = arith.constant 0 : index
    %c0_0 = arith.constant 0 : index
    %0 = vector.load %arg2[%c0, %c0_0] : memref<32x1152xbf16, #tpu.memory_space<vmem>>, vector<32x1152xbf16>
    %c0_1 = arith.constant 0 : index
    %c0_2 = arith.constant 0 : index
    %1 = vector.load %arg3[%c0_1, %c0_2] : memref<1152x256xbf16, #tpu.memory_space<vmem>>, vector<1152x256xbf16>
    %cst = arith.constant dense<0.000000e+00> : vector<32x256xf32>
    %2 = tpu.matmul %0, %1, %cst {dimension_numbers = #tpu.dot_dimension_numbers<[1], [0], [0], [1], [0, 0, 1, 1], [], []>} : vector<32x1152xbf16>, vector<1152x256xbf16>, vector<32x256xf32> -> vector<32x256xf32>
    %c0_3 = arith.constant 0 : index
    %c0_4 = arith.constant 0 : index
    %3 = vector.load %arg4[%c0_3, %c0_4] : memref<1x256xf32, #tpu.memory_space<vmem>>, vector<1x256xf32>
    %4 = vector.broadcast %3 : vector<1x256xf32> to vector<32x256xf32>
    %5 = arith.addf %2, %4 : vector<32x256xf32>
    %cst_5 = arith.constant 0.000000e+00 : f32
    %6 = vector.broadcast %cst_5 : f32 to vector<32x256xf32>
    %7 = arith.maximumf %5, %6 : vector<32x256xf32>
    %8 = arith.truncf %7 : vector<32x256xf32> to vector<32x256xbf16>
    %c0_6 = arith.constant 0 : index
    %c0_7 = arith.constant 0 : index
    %9 = vector.load %arg5[%c0_6, %c0_7] : memref<32x256xbf16, #tpu.memory_space<vmem>>, vector<32x256xbf16>
    tpu.vector_store %arg5[%c0_6, %c0_7], %8 {strides = array<i32>} : memref<32x256xbf16, #tpu.memory_space<vmem>>, vector<32x256xbf16>,
    return
  }
  func.func @transform_0(%arg0: i32, %arg1: i32) -> (i32, i32) {
    %c0_i32 = arith.constant 0 : i32
    %c0_i32_0 = arith.constant 0 : i32
    return %arg0, %c0_i32 : i32, i32
  }
  func.func @transform_1(%arg0: i32, %arg1: i32) -> (i32, i32) {
    %c0_i32 = arith.constant 0 : i32
    %c0_i32_0 = arith.constant 0 : i32
    return %c0_i32, %arg1 : i32, i32
  }
  func.func @transform_2(%arg0: i32, %arg1: i32) -> (i32, i32) {
    %c0_i32 = arith.constant 0 : i32
    %c0_i32_0 = arith.constant 0 : i32
    return %c0_i32, %arg1 : i32, i32
  }
  func.func @transform_3(%arg0: i32, %arg1: i32) -> (i32, i32) {
    %c0_i32 = arith.constant 0 : i32
    return %arg0, %arg1 : i32, i32
  }
}

module attributes {stable_mosaic.version = 11 : i64} {
  func.func @kernel(%arg0: i32, %arg1: i32, %arg2: memref<32x128xbf16, #tpu.memory_space<vmem>>, %arg3: memref<128x256xbf16, #tpu.memory_space<vmem>>, %arg4: memref<1x256xf32, #tpu.memory_space<vmem>>, %arg5: memref<32x256xbf16, #tpu.memory_space<vmem>>) attributes {dimension_semantics = [#tpu.dimension_semantics<parallel>, #tpu.dimension_semantics<parallel>], iteration_bounds = array<i64: 1, 1>, scalar_prefetch = 0 : i64, scratch_operands = 0 : i64, tpu.core_type = #tpu.core_type<tc>, window_params = [{transform_indices = @transform_0, window_bounds = array<i64: 32, 128>}, {transform_indices = @transform_1, window_bounds = array<i64: 128, 256>}, {transform_indices = @transform_2, window_bounds = array<i64: 1, 256>}, {transform_indices = @transform_3, window_bounds = array<i64: 32, 256>}]} {
    %c0 = arith.constant 0 : index
    %c0_0 = arith.constant 0 : index
    %0 = vector.load %arg2[%c0, %c0_0] : memref<32x128xbf16, #tpu.memory_space<vmem>>, vector<32x128xbf16>
    %c0_1 = arith.constant 0 : index
    %c0_2 = arith.constant 0 : index
    %1 = vector.load %arg3[%c0_1, %c0_2] : memref<128x256xbf16, #tpu.memory_space<vmem>>, vector<128x256xbf16>
    %cst = arith.constant dense<0.000000e+00> : vector<32x256xf32>
    %2 = tpu.matmul %0, %1, %cst {dimension_numbers = #tpu.dot_dimension_numbers<[1], [0], [0], [1], [0, 0, 1, 1], [], []>} : vector<32x128xbf16>, vector<128x256xbf16>, vector<32x256xf32> -> vector<32x256xf32>
    %c0_3 = arith.constant 0 : index
    %c0_4 = arith.constant 0 : index
    %3 = vector.load %arg4[%c0_3, %c0_4] : memref<1x256xf32, #tpu.memory_space<vmem>>, vector<1x256xf32>
    %4 = vector.broadcast %3 : vector<1x256xf32> to vector<32x256xf32>
    %5 = arith.addf %2, %4 : vector<32x256xf32>
    %6 = arith.truncf %5 : vector<32x256xf32> to vector<32x256xbf16>
    %c0_5 = arith.constant 0 : index
    %c0_6 = arith.constant 0 : index
    %7 = vector.load %arg5[%c0_5, %c0_6] : memref<32x256xbf16, #tpu.memory_space<vmem>>, vector<32x256xbf16>
    tpu.vector_store %arg5[%c0_5, %c0_6], %6 {strides = array<i32>} : memref<32x256xbf16, #tpu.memory_space<vmem>>, vector<32x256xbf16>,
    return
  }
  func.func @transform_0(%arg0: i32, %arg1: i32) -> (i32, i32) {
    %c0_i32 = arith.constant 0 : i32
    %c0_i32_0 = arith.constant 0 : i32
    return %arg0, %c0_i32 : i32, i32
  }
  func.func @transform_1(%arg0: i32, %arg1: i32) -> (i32, i32) {
    %c0_i32 = arith.constant 0 : i32
    %c0_i32_0 = arith.constant 0 : i32
    return %c0_i32, %arg1 : i32, i32
  }
  func.func @transform_2(%arg0: i32, %arg1: i32) -> (i32, i32) {
    %c0_i32 = arith.constant 0 : i32
    %c0_i32_0 = arith.constant 0 : i32
    return %c0_i32, %arg1 : i32, i32
  }
  func.func @transform_3(%arg0: i32, %arg1: i32) -> (i32, i32) {
    %c0_i32 = arith.constant 0 : i32
    return %arg0, %arg1 : i32, i32
  }
}

module attributes {stable_mosaic.version = 11 : i64} {
  func.func @kernel(%arg0: i32, %arg1: i32, %arg2: memref<32x2304xbf16, #tpu.memory_space<vmem>>, %arg3: memref<2304x256xbf16, #tpu.memory_space<vmem>>, %arg4: memref<1x256xf32, #tpu.memory_space<vmem>>, %arg5: memref<32x256xbf16, #tpu.memory_space<vmem>>, %arg6: memref<32x256xbf16, #tpu.memory_space<vmem>>) attributes {dimension_semantics = [#tpu.dimension_semantics<parallel>, #tpu.dimension_semantics<parallel>], iteration_bounds = array<i64: 1, 1>, scalar_prefetch = 0 : i64, scratch_operands = 0 : i64, tpu.core_type = #tpu.core_type<tc>, window_params = [{transform_indices = @transform_0, window_bounds = array<i64: 32, 2304>}, {transform_indices = @transform_1, window_bounds = array<i64: 2304, 256>}, {transform_indices = @transform_2, window_bounds = array<i64: 1, 256>}, {transform_indices = @transform_3, window_bounds = array<i64: 32, 256>}, {transform_indices = @transform_4, window_bounds = array<i64: 32, 256>}]} {
    %c0 = arith.constant 0 : index
    %c0_0 = arith.constant 0 : index
    %0 = vector.load %arg2[%c0, %c0_0] : memref<32x2304xbf16, #tpu.memory_space<vmem>>, vector<32x2304xbf16>
    %c0_1 = arith.constant 0 : index
    %c0_2 = arith.constant 0 : index
    %1 = vector.load %arg3[%c0_1, %c0_2] : memref<2304x256xbf16, #tpu.memory_space<vmem>>, vector<2304x256xbf16>
    %cst = arith.constant dense<0.000000e+00> : vector<32x256xf32>
    %2 = tpu.matmul %0, %1, %cst {dimension_numbers = #tpu.dot_dimension_numbers<[1], [0], [0], [1], [0, 0, 1, 1], [], []>} : vector<32x2304xbf16>, vector<2304x256xbf16>, vector<32x256xf32> -> vector<32x256xf32>
    %c0_3 = arith.constant 0 : index
    %c0_4 = arith.constant 0 : index
    %3 = vector.load %arg4[%c0_3, %c0_4] : memref<1x256xf32, #tpu.memory_space<vmem>>, vector<1x256xf32>
    %4 = vector.broadcast %3 : vector<1x256xf32> to vector<32x256xf32>
    %5 = arith.addf %2, %4 : vector<32x256xf32>
    %c0_5 = arith.constant 0 : index
    %c0_6 = arith.constant 0 : index
    %6 = vector.load %arg5[%c0_5, %c0_6] : memref<32x256xbf16, #tpu.memory_space<vmem>>, vector<32x256xbf16>
    %7 = arith.extf %6 : vector<32x256xbf16> to vector<32x256xf32>
    %8 = arith.addf %5, %7 : vector<32x256xf32>
    %cst_7 = arith.constant 0.000000e+00 : f32
    %9 = vector.broadcast %cst_7 : f32 to vector<32x256xf32>
    %10 = arith.maximumf %8, %9 : vector<32x256xf32>
    %11 = arith.truncf %10 : vector<32x256xf32> to vector<32x256xbf16>
    %c0_8 = arith.constant 0 : index
    %c0_9 = arith.constant 0 : index
    %12 = vector.load %arg6[%c0_8, %c0_9] : memref<32x256xbf16, #tpu.memory_space<vmem>>, vector<32x256xbf16>
    tpu.vector_store %arg6[%c0_8, %c0_9], %11 {strides = array<i32>} : memref<32x256xbf16, #tpu.memory_space<vmem>>, vector<32x256xbf16>,
    return
  }
  func.func @transform_0(%arg0: i32, %arg1: i32) -> (i32, i32) {
    %c0_i32 = arith.constant 0 : i32
    %c0_i32_0 = arith.constant 0 : i32
    return %arg0, %c0_i32 : i32, i32
  }
  func.func @transform_1(%arg0: i32, %arg1: i32) -> (i32, i32) {
    %c0_i32 = arith.constant 0 : i32
    %c0_i32_0 = arith.constant 0 : i32
    return %c0_i32, %arg1 : i32, i32
  }
  func.func @transform_2(%arg0: i32, %arg1: i32) -> (i32, i32) {
    %c0_i32 = arith.constant 0 : i32
    %c0_i32_0 = arith.constant 0 : i32
    return %c0_i32, %arg1 : i32, i32
  }
  func.func @transform_3(%arg0: i32, %arg1: i32) -> (i32, i32) {
    %c0_i32 = arith.constant 0 : i32
    return %arg0, %arg1 : i32, i32
  }
  func.func @transform_4(%arg0: i32, %arg1: i32) -> (i32, i32) {
    %c0_i32 = arith.constant 0 : i32
    return %arg0, %arg1 : i32, i32
  }
}

module attributes {stable_mosaic.version = 11 : i64} {
  func.func @kernel(%arg0: i32, %arg1: i32, %arg2: memref<32x2304xbf16, #tpu.memory_space<vmem>>, %arg3: memref<2304x256xbf16, #tpu.memory_space<vmem>>, %arg4: memref<1x256xf32, #tpu.memory_space<vmem>>, %arg5: memref<32x256xbf16, #tpu.memory_space<vmem>>) attributes {dimension_semantics = [#tpu.dimension_semantics<parallel>, #tpu.dimension_semantics<parallel>], iteration_bounds = array<i64: 1, 1>, scalar_prefetch = 0 : i64, scratch_operands = 0 : i64, tpu.core_type = #tpu.core_type<tc>, window_params = [{transform_indices = @transform_0, window_bounds = array<i64: 32, 2304>}, {transform_indices = @transform_1, window_bounds = array<i64: 2304, 256>}, {transform_indices = @transform_2, window_bounds = array<i64: 1, 256>}, {transform_indices = @transform_3, window_bounds = array<i64: 32, 256>}]} {
    %c0 = arith.constant 0 : index
    %c0_0 = arith.constant 0 : index
    %0 = vector.load %arg2[%c0, %c0_0] : memref<32x2304xbf16, #tpu.memory_space<vmem>>, vector<32x2304xbf16>
    %c0_1 = arith.constant 0 : index
    %c0_2 = arith.constant 0 : index
    %1 = vector.load %arg3[%c0_1, %c0_2] : memref<2304x256xbf16, #tpu.memory_space<vmem>>, vector<2304x256xbf16>
    %cst = arith.constant dense<0.000000e+00> : vector<32x256xf32>
    %2 = tpu.matmul %0, %1, %cst {dimension_numbers = #tpu.dot_dimension_numbers<[1], [0], [0], [1], [0, 0, 1, 1], [], []>} : vector<32x2304xbf16>, vector<2304x256xbf16>, vector<32x256xf32> -> vector<32x256xf32>
    %c0_3 = arith.constant 0 : index
    %c0_4 = arith.constant 0 : index
    %3 = vector.load %arg4[%c0_3, %c0_4] : memref<1x256xf32, #tpu.memory_space<vmem>>, vector<1x256xf32>
    %4 = vector.broadcast %3 : vector<1x256xf32> to vector<32x256xf32>
    %5 = arith.addf %2, %4 : vector<32x256xf32>
    %cst_5 = arith.constant 0.000000e+00 : f32
    %6 = vector.broadcast %cst_5 : f32 to vector<32x256xf32>
    %7 = arith.maximumf %5, %6 : vector<32x256xf32>
    %8 = arith.truncf %7 : vector<32x256xf32> to vector<32x256xbf16>
    %c0_6 = arith.constant 0 : index
    %c0_7 = arith.constant 0 : index
    %9 = vector.load %arg5[%c0_6, %c0_7] : memref<32x256xbf16, #tpu.memory_space<vmem>>, vector<32x256xbf16>
    tpu.vector_store %arg5[%c0_6, %c0_7], %8 {strides = array<i32>} : memref<32x256xbf16, #tpu.memory_space<vmem>>, vector<32x256xbf16>,
    return
  }
  func.func @transform_0(%arg0: i32, %arg1: i32) -> (i32, i32) {
    %c0_i32 = arith.constant 0 : i32
    %c0_i32_0 = arith.constant 0 : i32
    return %arg0, %c0_i32 : i32, i32
  }
  func.func @transform_1(%arg0: i32, %arg1: i32) -> (i32, i32) {
    %c0_i32 = arith.constant 0 : i32
    %c0_i32_0 = arith.constant 0 : i32
    return %c0_i32, %arg1 : i32, i32
  }
  func.func @transform_2(%arg0: i32, %arg1: i32) -> (i32, i32) {
    %c0_i32 = arith.constant 0 : i32
    %c0_i32_0 = arith.constant 0 : i32
    return %c0_i32, %arg1 : i32, i32
  }
  func.func @transform_3(%arg0: i32, %arg1: i32) -> (i32, i32) {
    %c0_i32 = arith.constant 0 : i32
    return %arg0, %arg1 : i32, i32
  }
}

module attributes {stable_mosaic.version = 11 : i64} {
  func.func @kernel(%arg0: i32, %arg1: i32, %arg2: memref<8x2304xbf16, #tpu.memory_space<vmem>>, %arg3: memref<2304x256xbf16, #tpu.memory_space<vmem>>, %arg4: memref<1x256xf32, #tpu.memory_space<vmem>>, %arg5: memref<8x256xbf16, #tpu.memory_space<vmem>>) attributes {dimension_semantics = [#tpu.dimension_semantics<parallel>, #tpu.dimension_semantics<parallel>], iteration_bounds = array<i64: 1, 2>, scalar_prefetch = 0 : i64, scratch_operands = 0 : i64, tpu.core_type = #tpu.core_type<tc>, window_params = [{transform_indices = @transform_0, window_bounds = array<i64: 8, 2304>}, {transform_indices = @transform_1, window_bounds = array<i64: 2304, 256>}, {transform_indices = @transform_2, window_bounds = array<i64: 1, 256>}, {transform_indices = @transform_3, window_bounds = array<i64: 8, 256>}]} {
    %c0 = arith.constant 0 : index
    %c0_0 = arith.constant 0 : index
    %0 = vector.load %arg2[%c0, %c0_0] : memref<8x2304xbf16, #tpu.memory_space<vmem>>, vector<8x2304xbf16>
    %c0_1 = arith.constant 0 : index
    %c0_2 = arith.constant 0 : index
    %1 = vector.load %arg3[%c0_1, %c0_2] : memref<2304x256xbf16, #tpu.memory_space<vmem>>, vector<2304x256xbf16>
    %cst = arith.constant dense<0.000000e+00> : vector<8x256xf32>
    %2 = tpu.matmul %0, %1, %cst {dimension_numbers = #tpu.dot_dimension_numbers<[1], [0], [0], [1], [0, 0, 1, 1], [], []>} : vector<8x2304xbf16>, vector<2304x256xbf16>, vector<8x256xf32> -> vector<8x256xf32>
    %c0_3 = arith.constant 0 : index
    %c0_4 = arith.constant 0 : index
    %3 = vector.load %arg4[%c0_3, %c0_4] : memref<1x256xf32, #tpu.memory_space<vmem>>, vector<1x256xf32>
    %4 = vector.broadcast %3 : vector<1x256xf32> to vector<8x256xf32>
    %5 = arith.addf %2, %4 : vector<8x256xf32>
    %cst_5 = arith.constant 0.000000e+00 : f32
    %6 = vector.broadcast %cst_5 : f32 to vector<8x256xf32>
    %7 = arith.maximumf %5, %6 : vector<8x256xf32>
    %8 = arith.truncf %7 : vector<8x256xf32> to vector<8x256xbf16>
    %c0_6 = arith.constant 0 : index
    %c0_7 = arith.constant 0 : index
    %9 = vector.load %arg5[%c0_6, %c0_7] : memref<8x256xbf16, #tpu.memory_space<vmem>>, vector<8x256xbf16>
    tpu.vector_store %arg5[%c0_6, %c0_7], %8 {strides = array<i32>} : memref<8x256xbf16, #tpu.memory_space<vmem>>, vector<8x256xbf16>,
    return
  }
  func.func @transform_0(%arg0: i32, %arg1: i32) -> (i32, i32) {
    %c0_i32 = arith.constant 0 : i32
    %c0_i32_0 = arith.constant 0 : i32
    return %arg0, %c0_i32 : i32, i32
  }
  func.func @transform_1(%arg0: i32, %arg1: i32) -> (i32, i32) {
    %c0_i32 = arith.constant 0 : i32
    %c0_i32_0 = arith.constant 0 : i32
    return %c0_i32, %arg1 : i32, i32
  }
  func.func @transform_2(%arg0: i32, %arg1: i32) -> (i32, i32) {
    %c0_i32 = arith.constant 0 : i32
    %c0_i32_0 = arith.constant 0 : i32
    return %c0_i32, %arg1 : i32, i32
  }
  func.func @transform_3(%arg0: i32, %arg1: i32) -> (i32, i32) {
    %c0_i32 = arith.constant 0 : i32
    return %arg0, %arg1 : i32, i32
  }
}

module attributes {stable_mosaic.version = 11 : i64} {
  func.func @kernel(%arg0: i32, %arg1: i32, %arg2: memref<8x256xbf16, #tpu.memory_space<vmem>>, %arg3: memref<256x256xbf16, #tpu.memory_space<vmem>>, %arg4: memref<1x256xf32, #tpu.memory_space<vmem>>, %arg5: memref<8x256xbf16, #tpu.memory_space<vmem>>) attributes {dimension_semantics = [#tpu.dimension_semantics<parallel>, #tpu.dimension_semantics<parallel>], iteration_bounds = array<i64: 1, 2>, scalar_prefetch = 0 : i64, scratch_operands = 0 : i64, tpu.core_type = #tpu.core_type<tc>, window_params = [{transform_indices = @transform_0, window_bounds = array<i64: 8, 256>}, {transform_indices = @transform_1, window_bounds = array<i64: 256, 256>}, {transform_indices = @transform_2, window_bounds = array<i64: 1, 256>}, {transform_indices = @transform_3, window_bounds = array<i64: 8, 256>}]} {
    %c0 = arith.constant 0 : index
    %c0_0 = arith.constant 0 : index
    %0 = vector.load %arg2[%c0, %c0_0] : memref<8x256xbf16, #tpu.memory_space<vmem>>, vector<8x256xbf16>
    %c0_1 = arith.constant 0 : index
    %c0_2 = arith.constant 0 : index
    %1 = vector.load %arg3[%c0_1, %c0_2] : memref<256x256xbf16, #tpu.memory_space<vmem>>, vector<256x256xbf16>
    %cst = arith.constant dense<0.000000e+00> : vector<8x256xf32>
    %2 = tpu.matmul %0, %1, %cst {dimension_numbers = #tpu.dot_dimension_numbers<[1], [0], [0], [1], [0, 0, 1, 1], [], []>} : vector<8x256xbf16>, vector<256x256xbf16>, vector<8x256xf32> -> vector<8x256xf32>
    %c0_3 = arith.constant 0 : index
    %c0_4 = arith.constant 0 : index
    %3 = vector.load %arg4[%c0_3, %c0_4] : memref<1x256xf32, #tpu.memory_space<vmem>>, vector<1x256xf32>
    %4 = vector.broadcast %3 : vector<1x256xf32> to vector<8x256xf32>
    %5 = arith.addf %2, %4 : vector<8x256xf32>
    %6 = arith.truncf %5 : vector<8x256xf32> to vector<8x256xbf16>
    %c0_5 = arith.constant 0 : index
    %c0_6 = arith.constant 0 : index
    %7 = vector.load %arg5[%c0_5, %c0_6] : memref<8x256xbf16, #tpu.memory_space<vmem>>, vector<8x256xbf16>
    tpu.vector_store %arg5[%c0_5, %c0_6], %6 {strides = array<i32>} : memref<8x256xbf16, #tpu.memory_space<vmem>>, vector<8x256xbf16>,
    return
  }
  func.func @transform_0(%arg0: i32, %arg1: i32) -> (i32, i32) {
    %c0_i32 = arith.constant 0 : i32
    %c0_i32_0 = arith.constant 0 : i32
    return %arg0, %c0_i32 : i32, i32
  }
  func.func @transform_1(%arg0: i32, %arg1: i32) -> (i32, i32) {
    %c0_i32 = arith.constant 0 : i32
    %c0_i32_0 = arith.constant 0 : i32
    return %c0_i32, %arg1 : i32, i32
  }
  func.func @transform_2(%arg0: i32, %arg1: i32) -> (i32, i32) {
    %c0_i32 = arith.constant 0 : i32
    %c0_i32_0 = arith.constant 0 : i32
    return %c0_i32, %arg1 : i32, i32
  }
  func.func @transform_3(%arg0: i32, %arg1: i32) -> (i32, i32) {
    %c0_i32 = arith.constant 0 : i32
    return %arg0, %arg1 : i32, i32
  }
}

module attributes {stable_mosaic.version = 11 : i64} {
  func.func @kernel(%arg0: i32, %arg1: i32, %arg2: memref<8x4608xbf16, #tpu.memory_space<vmem>>, %arg3: memref<4608x256xbf16, #tpu.memory_space<vmem>>, %arg4: memref<1x256xf32, #tpu.memory_space<vmem>>, %arg5: memref<8x256xbf16, #tpu.memory_space<vmem>>, %arg6: memref<8x256xbf16, #tpu.memory_space<vmem>>) attributes {dimension_semantics = [#tpu.dimension_semantics<parallel>, #tpu.dimension_semantics<parallel>], iteration_bounds = array<i64: 1, 2>, scalar_prefetch = 0 : i64, scratch_operands = 0 : i64, tpu.core_type = #tpu.core_type<tc>, window_params = [{transform_indices = @transform_0, window_bounds = array<i64: 8, 4608>}, {transform_indices = @transform_1, window_bounds = array<i64: 4608, 256>}, {transform_indices = @transform_2, window_bounds = array<i64: 1, 256>}, {transform_indices = @transform_3, window_bounds = array<i64: 8, 256>}, {transform_indices = @transform_4, window_bounds = array<i64: 8, 256>}]} {
    %c0 = arith.constant 0 : index
    %c0_0 = arith.constant 0 : index
    %0 = vector.load %arg2[%c0, %c0_0] : memref<8x4608xbf16, #tpu.memory_space<vmem>>, vector<8x4608xbf16>
    %c0_1 = arith.constant 0 : index
    %c0_2 = arith.constant 0 : index
    %1 = vector.load %arg3[%c0_1, %c0_2] : memref<4608x256xbf16, #tpu.memory_space<vmem>>, vector<4608x256xbf16>
    %cst = arith.constant dense<0.000000e+00> : vector<8x256xf32>
    %2 = tpu.matmul %0, %1, %cst {dimension_numbers = #tpu.dot_dimension_numbers<[1], [0], [0], [1], [0, 0, 1, 1], [], []>} : vector<8x4608xbf16>, vector<4608x256xbf16>, vector<8x256xf32> -> vector<8x256xf32>
    %c0_3 = arith.constant 0 : index
    %c0_4 = arith.constant 0 : index
    %3 = vector.load %arg4[%c0_3, %c0_4] : memref<1x256xf32, #tpu.memory_space<vmem>>, vector<1x256xf32>
    %4 = vector.broadcast %3 : vector<1x256xf32> to vector<8x256xf32>
    %5 = arith.addf %2, %4 : vector<8x256xf32>
    %c0_5 = arith.constant 0 : index
    %c0_6 = arith.constant 0 : index
    %6 = vector.load %arg5[%c0_5, %c0_6] : memref<8x256xbf16, #tpu.memory_space<vmem>>, vector<8x256xbf16>
    %7 = arith.extf %6 : vector<8x256xbf16> to vector<8x256xf32>
    %8 = arith.addf %5, %7 : vector<8x256xf32>
    %cst_7 = arith.constant 0.000000e+00 : f32
    %9 = vector.broadcast %cst_7 : f32 to vector<8x256xf32>
    %10 = arith.maximumf %8, %9 : vector<8x256xf32>
    %11 = arith.truncf %10 : vector<8x256xf32> to vector<8x256xbf16>
    %c0_8 = arith.constant 0 : index
    %c0_9 = arith.constant 0 : index
    %12 = vector.load %arg6[%c0_8, %c0_9] : memref<8x256xbf16, #tpu.memory_space<vmem>>, vector<8x256xbf16>
    tpu.vector_store %arg6[%c0_8, %c0_9], %11 {strides = array<i32>} : memref<8x256xbf16, #tpu.memory_space<vmem>>, vector<8x256xbf16>,
    return
  }
  func.func @transform_0(%arg0: i32, %arg1: i32) -> (i32, i32) {
    %c0_i32 = arith.constant 0 : i32
    %c0_i32_0 = arith.constant 0 : i32
    return %arg0, %c0_i32 : i32, i32
  }
  func.func @transform_1(%arg0: i32, %arg1: i32) -> (i32, i32) {
    %c0_i32 = arith.constant 0 : i32
    %c0_i32_0 = arith.constant 0 : i32
    return %c0_i32, %arg1 : i32, i32
  }
  func.func @transform_2(%arg0: i32, %arg1: i32) -> (i32, i32) {
    %c0_i32 = arith.constant 0 : i32
    %c0_i32_0 = arith.constant 0 : i32
    return %c0_i32, %arg1 : i32, i32
  }
  func.func @transform_3(%arg0: i32, %arg1: i32) -> (i32, i32) {
    %c0_i32 = arith.constant 0 : i32
    return %arg0, %arg1 : i32, i32
  }
  func.func @transform_4(%arg0: i32, %arg1: i32) -> (i32, i32) {
    %c0_i32 = arith.constant 0 : i32
    return %arg0, %arg1 : i32, i32
  }
}

module attributes {stable_mosaic.version = 11 : i64} {
  func.func @kernel(%arg0: i32, %arg1: i32, %arg2: memref<8x4608xbf16, #tpu.memory_space<vmem>>, %arg3: memref<4608x256xbf16, #tpu.memory_space<vmem>>, %arg4: memref<1x256xf32, #tpu.memory_space<vmem>>, %arg5: memref<8x256xbf16, #tpu.memory_space<vmem>>) attributes {dimension_semantics = [#tpu.dimension_semantics<parallel>, #tpu.dimension_semantics<parallel>], iteration_bounds = array<i64: 1, 2>, scalar_prefetch = 0 : i64, scratch_operands = 0 : i64, tpu.core_type = #tpu.core_type<tc>, window_params = [{transform_indices = @transform_0, window_bounds = array<i64: 8, 4608>}, {transform_indices = @transform_1, window_bounds = array<i64: 4608, 256>}, {transform_indices = @transform_2, window_bounds = array<i64: 1, 256>}, {transform_indices = @transform_3, window_bounds = array<i64: 8, 256>}]} {
    %c0 = arith.constant 0 : index
    %c0_0 = arith.constant 0 : index
    %0 = vector.load %arg2[%c0, %c0_0] : memref<8x4608xbf16, #tpu.memory_space<vmem>>, vector<8x4608xbf16>
    %c0_1 = arith.constant 0 : index
    %c0_2 = arith.constant 0 : index
    %1 = vector.load %arg3[%c0_1, %c0_2] : memref<4608x256xbf16, #tpu.memory_space<vmem>>, vector<4608x256xbf16>
    %cst = arith.constant dense<0.000000e+00> : vector<8x256xf32>
    %2 = tpu.matmul %0, %1, %cst {dimension_numbers = #tpu.dot_dimension_numbers<[1], [0], [0], [1], [0, 0, 1, 1], [], []>} : vector<8x4608xbf16>, vector<4608x256xbf16>, vector<8x256xf32> -> vector<8x256xf32>
    %c0_3 = arith.constant 0 : index
    %c0_4 = arith.constant 0 : index
    %3 = vector.load %arg4[%c0_3, %c0_4] : memref<1x256xf32, #tpu.memory_space<vmem>>, vector<1x256xf32>
    %4 = vector.broadcast %3 : vector<1x256xf32> to vector<8x256xf32>
    %5 = arith.addf %2, %4 : vector<8x256xf32>
    %cst_5 = arith.constant 0.000000e+00 : f32
    %6 = vector.broadcast %cst_5 : f32 to vector<8x256xf32>
    %7 = arith.maximumf %5, %6 : vector<8x256xf32>
    %8 = arith.truncf %7 : vector<8x256xf32> to vector<8x256xbf16>
    %c0_6 = arith.constant 0 : index
    %c0_7 = arith.constant 0 : index
    %9 = vector.load %arg5[%c0_6, %c0_7] : memref<8x256xbf16, #tpu.memory_space<vmem>>, vector<8x256xbf16>
    tpu.vector_store %arg5[%c0_6, %c0_7], %8 {strides = array<i32>} : memref<8x256xbf16, #tpu.memory_space<vmem>>, vector<8x256xbf16>,
    return
  }
  func.func @transform_0(%arg0: i32, %arg1: i32) -> (i32, i32) {
    %c0_i32 = arith.constant 0 : i32
    %c0_i32_0 = arith.constant 0 : i32
    return %arg0, %c0_i32 : i32, i32
  }
  func.func @transform_1(%arg0: i32, %arg1: i32) -> (i32, i32) {
    %c0_i32 = arith.constant 0 : i32
    %c0_i32_0 = arith.constant 0 : i32
    return %c0_i32, %arg1 : i32, i32
  }
  func.func @transform_2(%arg0: i32, %arg1: i32) -> (i32, i32) {
    %c0_i32 = arith.constant 0 : i32
    %c0_i32_0 = arith.constant 0 : i32
    return %c0_i32, %arg1 : i32, i32
  }
  func.func @transform_3(%arg0: i32, %arg1: i32) -> (i32, i32) {
    %c0_i32 = arith.constant 0 : i32
    return %arg0, %arg1 : i32, i32
  }
}

module attributes {stable_mosaic.version = 11 : i64} {
  func.func @kernel(%arg0: i32, %arg1: i32, %arg2: memref<8x512xbf16, #tpu.memory_space<vmem>>, %arg3: memref<512x256xbf16, #tpu.memory_space<vmem>>, %arg4: memref<1x256xf32, #tpu.memory_space<vmem>>, %arg5: memref<8x256xbf16, #tpu.memory_space<vmem>>) attributes {dimension_semantics = [#tpu.dimension_semantics<parallel>, #tpu.dimension_semantics<parallel>], iteration_bounds = array<i64: 1, 4>, scalar_prefetch = 0 : i64, scratch_operands = 0 : i64, tpu.core_type = #tpu.core_type<tc>, window_params = [{transform_indices = @transform_0, window_bounds = array<i64: 8, 512>}, {transform_indices = @transform_1, window_bounds = array<i64: 512, 256>}, {transform_indices = @transform_2, window_bounds = array<i64: 1, 256>}, {transform_indices = @transform_3, window_bounds = array<i64: 8, 256>}]} {
    %c0 = arith.constant 0 : index
    %c0_0 = arith.constant 0 : index
    %0 = vector.load %arg2[%c0, %c0_0] : memref<8x512xbf16, #tpu.memory_space<vmem>>, vector<8x512xbf16>
    %c0_1 = arith.constant 0 : index
    %c0_2 = arith.constant 0 : index
    %1 = vector.load %arg3[%c0_1, %c0_2] : memref<512x256xbf16, #tpu.memory_space<vmem>>, vector<512x256xbf16>
    %cst = arith.constant dense<0.000000e+00> : vector<8x256xf32>
    %2 = tpu.matmul %0, %1, %cst {dimension_numbers = #tpu.dot_dimension_numbers<[1], [0], [0], [1], [0, 0, 1, 1], [], []>} : vector<8x512xbf16>, vector<512x256xbf16>, vector<8x256xf32> -> vector<8x256xf32>
    %c0_3 = arith.constant 0 : index
    %c0_4 = arith.constant 0 : index
    %3 = vector.load %arg4[%c0_3, %c0_4] : memref<1x256xf32, #tpu.memory_space<vmem>>, vector<1x256xf32>
    %4 = vector.broadcast %3 : vector<1x256xf32> to vector<8x256xf32>
    %5 = arith.addf %2, %4 : vector<8x256xf32>
    %cst_5 = arith.constant 0.000000e+00 : f32
    %6 = vector.broadcast %cst_5 : f32 to vector<8x256xf32>
    %7 = arith.maximumf %5, %6 : vector<8x256xf32>
    %8 = arith.truncf %7 : vector<8x256xf32> to vector<8x256xbf16>
    %c0_6 = arith.constant 0 : index
    %c0_7 = arith.constant 0 : index
    %9 = vector.load %arg5[%c0_6, %c0_7] : memref<8x256xbf16, #tpu.memory_space<vmem>>, vector<8x256xbf16>
    tpu.vector_store %arg5[%c0_6, %c0_7], %8 {strides = array<i32>} : memref<8x256xbf16, #tpu.memory_space<vmem>>, vector<8x256xbf16>,
    return
  }
  func.func @transform_0(%arg0: i32, %arg1: i32) -> (i32, i32) {
    %c0_i32 = arith.constant 0 : i32
    %c0_i32_0 = arith.constant 0 : i32
    return %arg0, %c0_i32 : i32, i32
  }
  func.func @transform_1(%arg0: i32, %arg1: i32) -> (i32, i32) {
    %c0_i32 = arith.constant 0 : i32
    %c0_i32_0 = arith.constant 0 : i32
    return %c0_i32, %arg1 : i32, i32
  }
  func.func @transform_2(%arg0: i32, %arg1: i32) -> (i32, i32) {
    %c0_i32 = arith.constant 0 : i32
    %c0_i32_0 = arith.constant 0 : i32
    return %c0_i32, %arg1 : i32, i32
  }
  func.func @transform_3(%arg0: i32, %arg1: i32) -> (i32, i32) {
    %c0_i32 = arith.constant 0 : i32
    return %arg0, %arg1 : i32, i32
  }
}

module attributes {stable_mosaic.version = 11 : i64} {
  func.func @kernel(%arg0: i32, %arg1: i32, %arg2: memref<32x256xbf16, #tpu.memory_space<vmem>>, %arg3: memref<256x256xbf16, #tpu.memory_space<vmem>>, %arg4: memref<1x256xf32, #tpu.memory_space<vmem>>, %arg5: memref<32x256xbf16, #tpu.memory_space<vmem>>) attributes {dimension_semantics = [#tpu.dimension_semantics<parallel>, #tpu.dimension_semantics<parallel>], iteration_bounds = array<i64: 1, 2>, scalar_prefetch = 0 : i64, scratch_operands = 0 : i64, tpu.core_type = #tpu.core_type<tc>, window_params = [{transform_indices = @transform_0, window_bounds = array<i64: 32, 256>}, {transform_indices = @transform_1, window_bounds = array<i64: 256, 256>}, {transform_indices = @transform_2, window_bounds = array<i64: 1, 256>}, {transform_indices = @transform_3, window_bounds = array<i64: 32, 256>}]} {
    %c0 = arith.constant 0 : index
    %c0_0 = arith.constant 0 : index
    %0 = vector.load %arg2[%c0, %c0_0] : memref<32x256xbf16, #tpu.memory_space<vmem>>, vector<32x256xbf16>
    %c0_1 = arith.constant 0 : index
    %c0_2 = arith.constant 0 : index
    %1 = vector.load %arg3[%c0_1, %c0_2] : memref<256x256xbf16, #tpu.memory_space<vmem>>, vector<256x256xbf16>
    %cst = arith.constant dense<0.000000e+00> : vector<32x256xf32>
    %2 = tpu.matmul %0, %1, %cst {dimension_numbers = #tpu.dot_dimension_numbers<[1], [0], [0], [1], [0, 0, 1, 1], [], []>} : vector<32x256xbf16>, vector<256x256xbf16>, vector<32x256xf32> -> vector<32x256xf32>
    %c0_3 = arith.constant 0 : index
    %c0_4 = arith.constant 0 : index
    %3 = vector.load %arg4[%c0_3, %c0_4] : memref<1x256xf32, #tpu.memory_space<vmem>>, vector<1x256xf32>
    %4 = vector.broadcast %3 : vector<1x256xf32> to vector<32x256xf32>
    %5 = arith.addf %2, %4 : vector<32x256xf32>
    %cst_5 = arith.constant 0.000000e+00 : f32
    %6 = vector.broadcast %cst_5 : f32 to vector<32x256xf32>
    %7 = arith.maximumf %5, %6 : vector<32x256xf32>
    %8 = arith.truncf %7 : vector<32x256xf32> to vector<32x256xbf16>
    %c0_6 = arith.constant 0 : index
    %c0_7 = arith.constant 0 : index
    %9 = vector.load %arg5[%c0_6, %c0_7] : memref<32x256xbf16, #tpu.memory_space<vmem>>, vector<32x256xbf16>
    tpu.vector_store %arg5[%c0_6, %c0_7], %8 {strides = array<i32>} : memref<32x256xbf16, #tpu.memory_space<vmem>>, vector<32x256xbf16>,
    return
  }
  func.func @transform_0(%arg0: i32, %arg1: i32) -> (i32, i32) {
    %c0_i32 = arith.constant 0 : i32
    %c0_i32_0 = arith.constant 0 : i32
    return %arg0, %c0_i32 : i32, i32
  }
  func.func @transform_1(%arg0: i32, %arg1: i32) -> (i32, i32) {
    %c0_i32 = arith.constant 0 : i32
    %c0_i32_0 = arith.constant 0 : i32
    return %c0_i32, %arg1 : i32, i32
  }
  func.func @transform_2(%arg0: i32, %arg1: i32) -> (i32, i32) {
    %c0_i32 = arith.constant 0 : i32
    %c0_i32_0 = arith.constant 0 : i32
    return %c0_i32, %arg1 : i32, i32
  }
  func.func @transform_3(%arg0: i32, %arg1: i32) -> (i32, i32) {
    %c0_i32 = arith.constant 0 : i32
    return %arg0, %arg1 : i32, i32
  }
}

module attributes {stable_mosaic.version = 11 : i64} {
  func.func @kernel(%arg0: i32, %arg1: i32, %arg2: memref<128x128xbf16, #tpu.memory_space<vmem>>, %arg3: memref<128x256xbf16, #tpu.memory_space<vmem>>, %arg4: memref<1x256xf32, #tpu.memory_space<vmem>>, %arg5: memref<128x256xbf16, #tpu.memory_space<vmem>>) attributes {dimension_semantics = [#tpu.dimension_semantics<parallel>, #tpu.dimension_semantics<parallel>], iteration_bounds = array<i64: 1, 1>, scalar_prefetch = 0 : i64, scratch_operands = 0 : i64, tpu.core_type = #tpu.core_type<tc>, window_params = [{transform_indices = @transform_0, window_bounds = array<i64: 128, 128>}, {transform_indices = @transform_1, window_bounds = array<i64: 128, 256>}, {transform_indices = @transform_2, window_bounds = array<i64: 1, 256>}, {transform_indices = @transform_3, window_bounds = array<i64: 128, 256>}]} {
    %c0 = arith.constant 0 : index
    %c0_0 = arith.constant 0 : index
    %0 = vector.load %arg2[%c0, %c0_0] : memref<128x128xbf16, #tpu.memory_space<vmem>>, vector<128x128xbf16>
    %c0_1 = arith.constant 0 : index
    %c0_2 = arith.constant 0 : index
    %1 = vector.load %arg3[%c0_1, %c0_2] : memref<128x256xbf16, #tpu.memory_space<vmem>>, vector<128x256xbf16>
    %cst = arith.constant dense<0.000000e+00> : vector<128x256xf32>
    %2 = tpu.matmul %0, %1, %cst {dimension_numbers = #tpu.dot_dimension_numbers<[1], [0], [0], [1], [0, 0, 1, 1], [], []>} : vector<128x128xbf16>, vector<128x256xbf16>, vector<128x256xf32> -> vector<128x256xf32>
    %c0_3 = arith.constant 0 : index
    %c0_4 = arith.constant 0 : index
    %3 = vector.load %arg4[%c0_3, %c0_4] : memref<1x256xf32, #tpu.memory_space<vmem>>, vector<1x256xf32>
    %4 = vector.broadcast %3 : vector<1x256xf32> to vector<128x256xf32>
    %5 = arith.addf %2, %4 : vector<128x256xf32>
    %cst_5 = arith.constant 0.000000e+00 : f32
    %6 = vector.broadcast %cst_5 : f32 to vector<128x256xf32>
    %7 = arith.maximumf %5, %6 : vector<128x256xf32>
    %8 = arith.truncf %7 : vector<128x256xf32> to vector<128x256xbf16>
    %c0_6 = arith.constant 0 : index
    %c0_7 = arith.constant 0 : index
    %9 = vector.load %arg5[%c0_6, %c0_7] : memref<128x256xbf16, #tpu.memory_space<vmem>>, vector<128x256xbf16>
    tpu.vector_store %arg5[%c0_6, %c0_7], %8 {strides = array<i32>} : memref<128x256xbf16, #tpu.memory_space<vmem>>, vector<128x256xbf16>,
    return
  }
  func.func @transform_0(%arg0: i32, %arg1: i32) -> (i32, i32) {
    %c0_i32 = arith.constant 0 : i32
    %c0_i32_0 = arith.constant 0 : i32
    return %arg0, %c0_i32 : i32, i32
  }
  func.func @transform_1(%arg0: i32, %arg1: i32) -> (i32, i32) {
    %c0_i32 = arith.constant 0 : i32
    %c0_i32_0 = arith.constant 0 : i32
    return %c0_i32, %arg1 : i32, i32
  }
  func.func @transform_2(%arg0: i32, %arg1: i32) -> (i32, i32) {
    %c0_i32 = arith.constant 0 : i32
    %c0_i32_0 = arith.constant 0 : i32
    return %c0_i32, %arg1 : i32, i32
  }
  func.func @transform_3(%arg0: i32, %arg1: i32) -> (i32, i32) {
    %c0_i32 = arith.constant 0 : i32
    return %arg0, %arg1 : i32, i32
  }
}

module attributes {stable_mosaic.version = 11 : i64} {
  func.func @kernel(%arg0: i32, %arg1: i32, %arg2: memref<512x64xbf16, #tpu.memory_space<vmem>>, %arg3: memref<64x128xbf16, #tpu.memory_space<vmem>>, %arg4: memref<1x128xf32, #tpu.memory_space<vmem>>, %arg5: memref<512x128xbf16, #tpu.memory_space<vmem>>) attributes {dimension_semantics = [#tpu.dimension_semantics<parallel>, #tpu.dimension_semantics<parallel>], iteration_bounds = array<i64: 1, 1>, scalar_prefetch = 0 : i64, scratch_operands = 0 : i64, tpu.core_type = #tpu.core_type<tc>, window_params = [{transform_indices = @transform_0, window_bounds = array<i64: 512, 64>}, {transform_indices = @transform_1, window_bounds = array<i64: 64, 128>}, {transform_indices = @transform_2, window_bounds = array<i64: 1, 128>}, {transform_indices = @transform_3, window_bounds = array<i64: 512, 128>}]} {
    %c0 = arith.constant 0 : index
    %c0_0 = arith.constant 0 : index
    %0 = vector.load %arg2[%c0, %c0_0] : memref<512x64xbf16, #tpu.memory_space<vmem>>, vector<512x64xbf16>
    %c0_1 = arith.constant 0 : index
    %c0_2 = arith.constant 0 : index
    %1 = vector.load %arg3[%c0_1, %c0_2] : memref<64x128xbf16, #tpu.memory_space<vmem>>, vector<64x128xbf16>
    %cst = arith.constant dense<0.000000e+00> : vector<512x128xf32>
    %2 = tpu.matmul %0, %1, %cst {dimension_numbers = #tpu.dot_dimension_numbers<[1], [0], [0], [1], [0, 0, 1, 1], [], []>} : vector<512x64xbf16>, vector<64x128xbf16>, vector<512x128xf32> -> vector<512x128xf32>
    %c0_3 = arith.constant 0 : index
    %c0_4 = arith.constant 0 : index
    %3 = vector.load %arg4[%c0_3, %c0_4] : memref<1x128xf32, #tpu.memory_space<vmem>>, vector<1x128xf32>
    %4 = vector.broadcast %3 : vector<1x128xf32> to vector<512x128xf32>
    %5 = arith.addf %2, %4 : vector<512x128xf32>
    %cst_5 = arith.constant 0.000000e+00 : f32
    %6 = vector.broadcast %cst_5 : f32 to vector<512x128xf32>
    %7 = arith.maximumf %5, %6 : vector<512x128xf32>
    %8 = arith.truncf %7 : vector<512x128xf32> to vector<512x128xbf16>
    %c0_6 = arith.constant 0 : index
    %c0_7 = arith.constant 0 : index
    %9 = vector.load %arg5[%c0_6, %c0_7] : memref<512x128xbf16, #tpu.memory_space<vmem>>, vector<512x128xbf16>
    tpu.vector_store %arg5[%c0_6, %c0_7], %8 {strides = array<i32>} : memref<512x128xbf16, #tpu.memory_space<vmem>>, vector<512x128xbf16>,
    return
  }
  func.func @transform_0(%arg0: i32, %arg1: i32) -> (i32, i32) {
    %c0_i32 = arith.constant 0 : i32
    %c0_i32_0 = arith.constant 0 : i32
    return %arg0, %c0_i32 : i32, i32
  }
  func.func @transform_1(%arg0: i32, %arg1: i32) -> (i32, i32) {
    %c0_i32 = arith.constant 0 : i32
    %c0_i32_0 = arith.constant 0 : i32
    return %c0_i32, %arg1 : i32, i32
  }
  func.func @transform_2(%arg0: i32, %arg1: i32) -> (i32, i32) {
    %c0_i32 = arith.constant 0 : i32
    %c0_i32_0 = arith.constant 0 : i32
    return %c0_i32, %arg1 : i32, i32
  }
  func.func @transform_3(%arg0: i32, %arg1: i32) -> (i32, i32) {
    %c0_i32 = arith.constant 0 : i32
    return %arg0, %arg1 : i32, i32
  }
}

module attributes {stable_mosaic.version = 11 : i64} {
  func.func @_convt_final_kernel(%arg0: i32, %arg1: memref<512x32xbf16, #tpu.memory_space<vmem>>, %arg2: memref<32x64xbf16, #tpu.memory_space<vmem>>, %arg3: memref<1x64xf32, #tpu.memory_space<vmem>>, %arg4: memref<64x4xf32, #tpu.memory_space<vmem>>, %arg5: memref<1x4xf32, #tpu.memory_space<vmem>>, %arg6: memref<512x4xf32, #tpu.memory_space<vmem>>) attributes {dimension_semantics = [#tpu.dimension_semantics<parallel>], iteration_bounds = array<i64: 4>, scalar_prefetch = 0 : i64, scratch_operands = 0 : i64, tpu.core_type = #tpu.core_type<tc>, window_params = [{transform_indices = @transform_0, window_bounds = array<i64: 512, 32>}, {pipeline_mode = #tpu.pipeline_mode<synchronous>, transform_indices = @transform_1, window_bounds = array<i64: 32, 64>}, {pipeline_mode = #tpu.pipeline_mode<synchronous>, transform_indices = @transform_2, window_bounds = array<i64: 1, 64>}, {pipeline_mode = #tpu.pipeline_mode<synchronous>, transform_indices = @transform_3, window_bounds = array<i64: 64, 4>}, {pipeline_mode = #tpu.pipeline_mode<synchronous>, transform_indices = @transform_4, window_bounds = array<i64: 1, 4>}, {transform_indices = @transform_5, window_bounds = array<i64: 512, 4>}]} {
    %c0 = arith.constant 0 : index
    %c0_0 = arith.constant 0 : index
    %0 = vector.load %arg1[%c0, %c0_0] : memref<512x32xbf16, #tpu.memory_space<vmem>>, vector<512x32xbf16>
    %c0_1 = arith.constant 0 : index
    %c0_2 = arith.constant 0 : index
    %1 = vector.load %arg2[%c0_1, %c0_2] : memref<32x64xbf16, #tpu.memory_space<vmem>>, vector<32x64xbf16>
    %cst = arith.constant dense<0.000000e+00> : vector<512x64xf32>
    %2 = tpu.matmul %0, %1, %cst {dimension_numbers = #tpu.dot_dimension_numbers<[1], [0], [0], [1], [0, 0, 1, 1], [], []>} : vector<512x32xbf16>, vector<32x64xbf16>, vector<512x64xf32> -> vector<512x64xf32>
    %c0_3 = arith.constant 0 : index
    %c0_4 = arith.constant 0 : index
    %3 = vector.load %arg3[%c0_3, %c0_4] : memref<1x64xf32, #tpu.memory_space<vmem>>, vector<1x64xf32>
    %4 = vector.broadcast %3 : vector<1x64xf32> to vector<512x64xf32>
    %5 = arith.addf %2, %4 : vector<512x64xf32>
    %cst_5 = arith.constant 0.000000e+00 : f32
    %6 = vector.broadcast %cst_5 : f32 to vector<512x64xf32>
    %7 = arith.maximumf %5, %6 : vector<512x64xf32>
    %c0_6 = arith.constant 0 : index
    %c0_7 = arith.constant 0 : index
    %8 = vector.load %arg4[%c0_6, %c0_7] : memref<64x4xf32, #tpu.memory_space<vmem>>, vector<64x4xf32>
    %cst_8 = arith.constant dense<0.000000e+00> : vector<512x4xf32>
    %9 = tpu.matmul %7, %8, %cst_8 {dimension_numbers = #tpu.dot_dimension_numbers<[1], [0], [0], [1], [0, 0, 1, 1], [], []>} : vector<512x64xf32>, vector<64x4xf32>, vector<512x4xf32> -> vector<512x4xf32>
    %c0_9 = arith.constant 0 : index
    %c0_10 = arith.constant 0 : index
    %10 = vector.load %arg5[%c0_9, %c0_10] : memref<1x4xf32, #tpu.memory_space<vmem>>, vector<1x4xf32>
    %11 = vector.broadcast %10 : vector<1x4xf32> to vector<512x4xf32>
    %12 = arith.addf %9, %11 : vector<512x4xf32>
    %c0_11 = arith.constant 0 : index
    %c0_12 = arith.constant 0 : index
    %13 = vector.load %arg6[%c0_11, %c0_12] : memref<512x4xf32, #tpu.memory_space<vmem>>, vector<512x4xf32>
    tpu.vector_store %arg6[%c0_11, %c0_12], %12 {strides = array<i32>} : memref<512x4xf32, #tpu.memory_space<vmem>>, vector<512x4xf32>,
    return
  }
  func.func @transform_0(%arg0: i32) -> (i32, i32) {
    %c0_i32 = arith.constant 0 : i32
    %c0_i32_0 = arith.constant 0 : i32
    return %arg0, %c0_i32 : i32, i32
  }
  func.func @transform_1(%arg0: i32) -> (i32, i32) {
    %c0_i32 = arith.constant 0 : i32
    %c0_i32_0 = arith.constant 0 : i32
    %c0_i32_1 = arith.constant 0 : i32
    return %c0_i32, %c0_i32_0 : i32, i32
  }
  func.func @transform_2(%arg0: i32) -> (i32, i32) {
    %c0_i32 = arith.constant 0 : i32
    %c0_i32_0 = arith.constant 0 : i32
    %c0_i32_1 = arith.constant 0 : i32
    return %c0_i32, %c0_i32_0 : i32, i32
  }
  func.func @transform_3(%arg0: i32) -> (i32, i32) {
    %c0_i32 = arith.constant 0 : i32
    %c0_i32_0 = arith.constant 0 : i32
    %c0_i32_1 = arith.constant 0 : i32
    return %c0_i32, %c0_i32_0 : i32, i32
  }
  func.func @transform_4(%arg0: i32) -> (i32, i32) {
    %c0_i32 = arith.constant 0 : i32
    %c0_i32_0 = arith.constant 0 : i32
    %c0_i32_1 = arith.constant 0 : i32
    return %c0_i32, %c0_i32_0 : i32, i32
  }
  func.func @transform_5(%arg0: i32) -> (i32, i32) {
    %c0_i32 = arith.constant 0 : i32
    %c0_i32_0 = arith.constant 0 : i32
    return %arg0, %c0_i32 : i32, i32
  }
}

</mosaic_0001>

<llo_original>
// kernel: tile.33
$region0: #{tile.33}
  #allocation0 [shape = 's32[1]{0}', space=sflag, size = 0x4, scoped, tag = 'scoped memory for tile.33']
  %s0 = inlined_call_operand.vmem [shape: f32[128], index: 0, kind: input, shape index: {}]
  %s1 = inlined_call_operand.vmem [shape: f32[4,128], index: 1, kind: output, shape index: {}]
  // Predicated region
  $region2: #{tile.33} parent=0 // pred_check
    _
  $region3: #{tile.33} parent=0 // pred_check_branch
    %3 = sbr.rel (0) target = $region5
  $region4: #{tile.33} parent=0 // pred_region
    _
  $region5: #{tile.33} parent=0 // pred_fallthru
    _
  %v4 = vld [vmem:[%s0] ss:$0 sm:$0xff]
  %5 = vst [vmem:[%s1] sm:$0xf] %v4

// kernel: tile.38
$region0: #{tile.38}
  #allocation0 [shape = 's32[1]{0}', space=sflag, size = 0x4, scoped, tag = 'scoped memory for tile.38']
  %s0 = inlined_call_operand.vmem [shape: f32[64], index: 0, kind: input, shape index: {}]
  %s1 = inlined_call_operand.vmem [shape: f32[4,64], index: 1, kind: output, shape index: {}]
  // Predicated region
  $region2: #{tile.38} parent=0 // pred_check
    _
  $region3: #{tile.38} parent=0 // pred_check_branch
    %3 = sbr.rel (0) target = $region5
  $region4: #{tile.38} parent=0 // pred_region
    _
  $region5: #{tile.38} parent=0 // pred_fallthru
    _
  %v4 = vld [vmem:[%s0] ss:$0 sm:$0xff]
  %5 = vst [vmem:[%s1] sm:$0xf] %v4

// kernel: tile.39
$region0: #{tile.39}
  %s0 = inlined_call_operand.vmem [shape: f32[4,64], index: 0, kind: input, shape index: {}]
  %s1 = inlined_call_operand.vmem [shape: f32[1,256], index: 1, kind: output, shape index: {}]
  $region1: #{tile.39} parent=0
    #allocation0 [shape = 'u8[8192]{0}', space=vmem, size = 0x2000, scoped, tag = 'scoped mem for output reshape']
    #allocation1 [shape = 'u8[4096]{0}', space=vmem, size = 0x1000, scoped, tag = 'scoped mem for input reshape']
    %s3 = sshll.u32 1, 4
    %s4 = ssub.s32 %s3, 1
    %v5 = vld [vmem:[%s0] sm:%s4]
    %6 = vst [vmem:[#allocation1] sm:%s4] %v5
    %s7 = smov 3
    %v8 = vld [vmem:[#allocation1] ss:$2 sm:%s7]
    %vm9 = vcmask 523264
    %10 = vst.msk [vmem:[#allocation0] ss:$8 sm:$0x3] %vm9, %v8
    %s11 = scalar_lea.vmem [#allocation1], 1
    %s12 = smov 3
    %v13 = vld [vmem:[%s11] ss:$2 sm:%s12]
    %14 = vrot.lane.b32.xlu0 %v13, 64
    %v15 = vpop.permute.xlu0 %14
    %vm16 = vcmask 1048064
    %17 = vst.msk [vmem:[#allocation0] ss:$8 sm:$0x3] %vm16, %v15
    %s19 = sshll.u32 1, 1
    %s20 = ssub.s32 %s19, 1
    %v22 = vld [vmem:[#allocation0] sm:%s20]
    %s23 = sshll.u32 1, 1
    %s24 = ssub.s32 %s23, 1
    %25 = vst [vmem:[%s1] sm:%s24] %v22
    %s26 = scalar_lea.vmem [#allocation0], 8
    %v27 = vld [vmem:[%s26] sm:%s20]
    %s28 = sshll.u32 1, 1
    %s29 = ssub.s32 %s28, 1
    %s30 = scalar_lea.vmem %s1, 1
    %31 = vst [vmem:[%s30] sm:%s29] %v27

// kernel: tile.43
$region0: #{tile.43}
  #allocation0 [shape = 's32[1]{0}', space=sflag, size = 0x4, scoped, tag = 'scoped memory for tile.43']
  %s0 = inlined_call_operand.vmem [shape: f32[32], index: 0, kind: input, shape index: {}]
  %s1 = inlined_call_operand.vmem [shape: f32[4,32], index: 1, kind: output, shape index: {}]
  // Predicated region
  $region2: #{tile.43} parent=0 // pred_check
    _
  $region3: #{tile.43} parent=0 // pred_check_branch
    %3 = sbr.rel (0) target = $region5
  $region4: #{tile.43} parent=0 // pred_region
    _
  $region5: #{tile.43} parent=0 // pred_fallthru
    _
  %v4 = vld [vmem:[%s0] ss:$0 sm:$0xff]
  %5 = vst [vmem:[%s1] sm:$0xf] %v4

// kernel: tile.44
$region0: #{tile.44}
  %s0 = inlined_call_operand.vmem [shape: f32[4,32], index: 0, kind: input, shape index: {}]
  %s1 = inlined_call_operand.vmem [shape: f32[1,128], index: 1, kind: output, shape index: {}]
  $region1: #{tile.44} parent=0
    #allocation0 [shape = 'u8[4096]{0}', space=vmem, size = 0x1000, scoped, tag = 'scoped mem for output reshape']
    #allocation1 [shape = 'u8[4096]{0}', space=vmem, size = 0x1000, scoped, tag = 'scoped mem for input reshape']
    %s3 = sshll.u32 1, 4
    %s4 = ssub.s32 %s3, 1
    %v5 = vld [vmem:[%s0] sm:%s4]
    %6 = vst [vmem:[#allocation1] sm:%s4] %v5
    %v7 = vld [vmem:[#allocation1] sm:$0x1]
    %vm8 = vcmask 261120
    %9 = vst.msk [vmem:[#allocation0] sm:$0x1] %vm8, %v7
    %s10 = scalar_lea.vmem [#allocation1], 3
    %v11 = vld [vmem:[%s10] sm:$0x1]
    %12 = vrot.lane.b32.xlu0 %v11, 96
    %v13 = vpop.permute.xlu0 %12
    %vm14 = vcmask 1048320
    %15 = vst.msk [vmem:[#allocation0] sm:$0x1] %vm14, %v13
    %s16 = scalar_lea.vmem [#allocation1], 2
    %v17 = vld [vmem:[%s16] sm:$0x1]
    %18 = vrot.lane.b32.xlu0 %v17, 64
    %v19 = vpop.permute.xlu0 %18
    %vm20 = vcmask 785920
    %21 = vst.msk [vmem:[#allocation0] sm:$0x1] %vm20, %v19
    %s22 = scalar_lea.vmem [#allocation1], 1
    %v23 = vld [vmem:[%s22] sm:$0x1]
    %24 = vrot.lane.b32.xlu0 %v23, 32
    %v25 = vpop.permute.xlu0 %24
    %vm26 = vcmask 523520
    %27 = vst.msk [vmem:[#allocation0] sm:$0x1] %vm26, %v25
    %s29 = sshll.u32 1, 1
    %s30 = ssub.s32 %s29, 1
    %v32 = vld [vmem:[#allocation0] sm:%s30]
    %s33 = sshll.u32 1, 1
    %s34 = ssub.s32 %s33, 1
    %35 = vst [vmem:[%s1] sm:%s34] %v32

// kernel: tile.48
$region0: #{tile.48}
  #allocation0 [shape = 's32[1]{0}', space=sflag, size = 0x4, scoped, tag = 'scoped memory for tile.48']
  %s0 = inlined_call_operand.vmem [shape: f32[16], index: 0, kind: input, shape index: {}]
  %s1 = inlined_call_operand.vmem [shape: f32[4,16], index: 1, kind: output, shape index: {}]
  // Predicated region
  $region2: #{tile.48} parent=0 // pred_check
    _
  $region3: #{tile.48} parent=0 // pred_check_branch
    %3 = sbr.rel (0) target = $region5
  $region4: #{tile.48} parent=0 // pred_region
    _
  $region5: #{tile.48} parent=0 // pred_fallthru
    _
  %v4 = vld [vmem:[%s0] ss:$0 sm:$0xff]
  %5 = vst [vmem:[%s1] sm:$0xf] %v4

// kernel: tile.49
$region0: #{tile.49}
  %s0 = inlined_call_operand.vmem [shape: f32[4,16], index: 0, kind: input, shape index: {}]
  %s1 = inlined_call_operand.vmem [shape: f32[1,64], index: 1, kind: output, shape index: {}]
  $region1: #{tile.49} parent=0
    #allocation0 [shape = 'u8[4096]{0}', space=vmem, size = 0x1000, scoped, tag = 'scoped mem for output reshape']
    #allocation1 [shape = 'u8[4096]{0}', space=vmem, size = 0x1000, scoped, tag = 'scoped mem for input reshape']
    %s3 = sshll.u32 1, 4
    %s4 = ssub.s32 %s3, 1
    %v5 = vld [vmem:[%s0] sm:%s4]
    %6 = vst [vmem:[#allocation1] sm:%s4] %v5
    %v7 = vld [vmem:[#allocation1] sm:$0x1]
    %vm8 = vcmask 130048
    %9 = vst.msk [vmem:[#allocation0] sm:$0x1] %vm8, %v7
    %s10 = scalar_lea.vmem [#allocation1], 3
    %v11 = vld [vmem:[%s10] sm:$0x1]
    %12 = vrot.lane.b32.xlu0 %v11, 48
    %v13 = vpop.permute.xlu0 %12
    %vm14 = vcmask 523648
    %15 = vst.msk [vmem:[#allocation0] sm:$0x1] %vm14, %v13
    %s16 = scalar_lea.vmem [#allocation1], 2
    %v17 = vld [vmem:[%s16] sm:$0x1]
    %18 = vrot.lane.b32.xlu0 %v17, 32
    %v19 = vpop.permute.xlu0 %18
    %vm20 = vcmask 392448
    %21 = vst.msk [vmem:[#allocation0] sm:$0x1] %vm20, %v19
    %s22 = scalar_lea.vmem [#allocation1], 1
    %v23 = vld [vmem:[%s22] sm:$0x1]
    %24 = vrot.lane.b32.xlu0 %v23, 16
    %v25 = vpop.permute.xlu0 %24
    %vm26 = vcmask 261248
    %27 = vst.msk [vmem:[#allocation0] sm:$0x1] %vm26, %v25
    %s29 = sshll.u32 1, 1
    %s30 = ssub.s32 %s29, 1
    %v32 = vld [vmem:[#allocation0] sm:%s30]
    %s33 = sshll.u32 1, 1
    %s34 = ssub.s32 %s33, 1
    %35 = vst [vmem:[%s1] sm:%s34] %v32

</llo_original>
